<compile_context>
chip_gen: v7x
topology: tpu7x:2x2x1
jax: 0.10.0
libtpu: 0.0.40
codegen_flags: <defaults>
</compile_context>

<pallas_src>
from functools import partial

import numpy as np
import jax
import jax.numpy as jnp
from jax.experimental import pallas as pl
from jax.experimental.pallas import tpu as pltpu

EPS_LN = 1e-6


# ----------------------------------------------------------------------------- helpers
def _full_spec(shape):
    # whole-array block (no grid); block_shape == array shape satisfies tiling rules
    return pl.BlockSpec(shape, lambda: (0,) * len(shape))


def _layernorm(h, alpha, beta):
    """torch-style LayerNorm: unbiased std (sum/(d-1)), eps added AFTER sqrt."""
    d = h.shape[-1]
    denom = max(d - 1, 1)                       # guard d == 1 (torch.std would be nan)
    mean = jnp.mean(h, axis=-1, keepdims=True)
    var = jnp.sum((h - mean) ** 2, axis=-1, keepdims=True) * (1.0 / denom)
    std = jnp.sqrt(var) + EPS_LN
    inv = pl.reciprocal(std, approx=True)       # EUP slot (otherwise idle in this kernel)
    inv = inv * (2.0 - std * inv)               # one Newton step -> f32-accurate, cheap VPU
    return (h - mean) * inv * alpha + beta


def trapz_weights(t_np):
    h = t_np[1:] - t_np[:-1]
    w = np.zeros_like(t_np)
    w[0] = h[0] / 2.0
    w[-1] = h[-1] / 2.0
    w[1:-1] = (h[:-1] + h[1:]) / 2.0
    return w


# --------------------------------------------------------------- parameter construction
def init_feedforward(key, in_d, hidden, num_classes):
    """'Math' layout params (same convention the pure-JAX reference uses)."""
    dims = [in_d] + list(hidden) + [num_classes]
    layers, lns = [], []
    for i in range(1, len(dims)):
        key, k1, k2 = jax.random.split(key, 3)
        w = jax.random.normal(k1, (dims[i - 1], dims[i]), jnp.float32) / np.sqrt(dims[i - 1])
        b = 0.1 * jax.random.normal(k2, (1, dims[i]), jnp.float32)
        layers.append((w, b))
    for h in hidden:
        key, k1, k2 = jax.random.split(key, 3)
        lns.append((jax.random.normal(k1, (1, h), jnp.float32),      # alpha ~ randn
                    jax.random.normal(k2, (1, h), jnp.float32)))     # beta  ~ randn
    return {"layers": layers, "ln": lns}, key


def pack_params_for_kernel(params):
    """Re-layout parameters for the fused kernel:
       * basis nets of each covariate stacked along a leading (nb, ...) axis
       * all last layers with out_features == 1 get their weight pre-transposed to a
         (1, h) row so the kernel uses a VPU multiply + lane reduce (no N=1 MXU pass).
    """
    packed_bl = []
    for cov_bases in params["BL"]:
        n_layers = len(cov_bases[0]["layers"])
        layers = []
        for l in range(n_layers - 1):
            w = jnp.stack([p["layers"][l][0] for p in cov_bases], axis=0)   # (nb, in, h)
            b = jnp.stack([p["layers"][l][1] for p in cov_bases], axis=0)   # (nb, 1, h)
            layers.append((w, b))
        w_last = jnp.stack([p["layers"][-1][0].reshape(1, -1) for p in cov_bases], axis=0)
        b_last = jnp.concatenate([p["layers"][-1][1].reshape(1, 1) for p in cov_bases], axis=1)
        layers.append((w_last, b_last))                                     # (nb,1,h), (1,nb)
        lns = []
        for l in range(n_layers - 1):
            a = jnp.stack([p["ln"][l][0] for p in cov_bases], axis=0)       # (nb, 1, h)
            be = jnp.stack([p["ln"][l][1] for p in cov_bases], axis=0)
            lns.append((a, be))
        packed_bl.append({"layers": layers, "ln": lns})

    ff = params["FF"]
    ff_layers = [(w, b) for (w, b) in ff["layers"][:-1]]
    w_last, b_last = ff["layers"][-1]
    ff_reduce_last = (w_last.shape[1] == 1)
    if ff_reduce_last:
        w_last = w_last.reshape(1, -1)                                      # (1, hidden_last)
    ff_layers.append((w_last, b_last))
    packed_ff = {"layers": ff_layers, "ln": list(ff["ln"])}
    return {"BL": packed_bl, "FF": packed_ff}, ff_reduce_last


# ------------------------------------------------------------------- fused forward pass
def adafnn_forward(x, packed, grids_col, tws, *,
                   structure, n_bases, num_classes, ff_reduce_last):
    func_ranges = [tuple(r) for r in structure["func"]]
    s0, s1 = structure["scalar"]
    ncov = len(func_ranges)
    n_scalar = s1 - s0
    n_bases = [int(n) for n in n_bases]
    feat_dim = int(sum(n_bases)) + n_scalar

    B, _ = x.shape
    B_pad = max(8, ((B + 7) // 8) * 8)                    # 8-sublane alignment
    x_pad = jnp.pad(x, ((0, B_pad - B), (0, 0))) if B_pad != B else x

    # flatten every operand (input + grids + quadrature weights + all params) into one
    # positional ref list; the kernel rebuilds the pytree of refs with the same treedef.
    operands = {"x": x_pad, "grids": list(grids_col), "tws": list(tws), "params": packed}
    flat, treedef = jax.tree_util.tree_flatten(operands)
    n_flat = len(flat)

    # static lane offsets of each score block inside the fused feature tile
    offs = [0]
    for nb in n_bases:
        offs.append(offs[-1] + nb)

    def kernel(*args):
        op_refs = args[:n_flat]
        o_ref = args[n_flat]
        basis_scr = args[n_flat + 1:n_flat + 1 + ncov]    # (J_i, nb_i) VMEM tiles
        feat_scr = args[n_flat + 1 + ncov]                # (B_pad, feat_dim) VMEM tile

        ops = jax.tree_util.tree_unflatten(treedef, op_refs)
        x_v = ops["x"][...]                               # (B_pad, D) in VMEM

        # ---------- basis networks + trapezoid scores (never leave VMEM) ----------
        for i, (a, b) in enumerate(func_ranges):
            t_col = ops["grids"][i][...]                  # (J, 1)
            tw = ops["tws"][i][...]                       # (1, J) trapezoid weights
            grp = ops["params"]["BL"][i]
            n_layers = len(grp["layers"])
            for j in range(n_bases[i]):                   # unrolled: same kernel, no launches
                t = t_col
                for l in range(n_layers - 1):
                    w = grp["layers"][l][0][j]            # (in, h)
                    bias = grp["layers"][l][1][j]         # (1, h)
                    if l == 0:
                        h = t * w + bias                  # (J,1)*(1,h): VPU outer product
                    else:
                        h = jnp.dot(t, w, preferred_element_type=jnp.float32) + bias
                    alpha = grp["ln"][l][0][j]            # (1, h)
                    beta = grp["ln"][l][1][j]
                    ln = _layernorm(h, alpha, beta)
                    t = jnp.maximum(h + ln, 0.0)          # dropout p=0 -> identity
                w_last = grp["layers"][-1][0][j]          # (1, h) pre-transposed
                col = jnp.sum(t * w_last, axis=-1, keepdims=True)     # (J,1) VPU mul + reduce
                basis_scr[i][:, j:j + 1] = col
            # assembled basis matrix (J, nb) + last-layer bias row (1, nb)
            basis = basis_scr[i][...] + grp["layers"][-1][1][...]
            xw = x_v[:, a:b] * tw                                     # quadrature-weighted input
            score = jnp.dot(xw, basis, preferred_element_type=jnp.float32)   # (B_pad, nb), no .T
            feat_scr[:, offs[i]:offs[i + 1]] = score

        # scalar covariates -> tail of the fused feature tile
        feat_scr[:, offs[-1]:offs[-1] + n_scalar] = x_v[:, s0:s1]

        # ---------- subsequent FeedForward network --------------------------------
        ffp = ops["params"]["FF"]
        t = feat_scr[...]
        for l in range(len(ffp["layers"]) - 1):
            w, bias = ffp["layers"][l]
            h = jnp.dot(t, w[...], preferred_element_type=jnp.float32) + bias[...]
            alpha, beta = ffp["ln"][l]
            ln = _layernorm(h, alpha[...], beta[...])
            t = jnp.maximum(h + ln, 0.0)
        w_last, b_last = ffp["layers"][-1]
        if ff_reduce_last:                                # num_classes == 1: VPU reduce, no MXU
            out = jnp.sum(t * w_last[...], axis=-1, keepdims=True) + b_last[...]
        else:
            out = jnp.dot(t, w_last[...], preferred_element_type=jnp.float32) + b_last[...]
        o_ref[...] = out                                  # single HBM store per forward

    scratch = [pltpu.VMEM((b - a, n_bases[i]), jnp.float32)
               for i, (a, b) in enumerate(func_ranges)]
    scratch.append(pltpu.VMEM((B_pad, feat_dim), jnp.float32))

    out = pl.pallas_call(
        kernel,
        out_shape=jax.ShapeDtypeStruct((B_pad, num_classes), jnp.float32),
        in_specs=[_full_spec(v.shape) for v in flat],
        out_specs=_full_spec((B_pad, num_classes)),
        scratch_shapes=scratch,
    )(*flat)
    return out[:B]


# ----------------------------------------------------------------- pure-JAX reference
def _ref_ff(t, params):
    n = len(params["layers"])
    for i in range(n - 1):
        w, b = params["layers"][i]
        alpha, beta = params["ln"][i]
        h = t @ w + b
        mean = h.mean(axis=-1, keepdims=True)
        std = jnp.sqrt(((h - mean) ** 2).sum(-1, keepdims=True) / (h.shape[-1] - 1)) + EPS_LN
        t = jnp.maximum(h + (h - mean) / std * alpha + beta, 0.0)
    w, b = params["layers"][-1]
    return t @ w + b


def _ref_trapz(y, t):
    h = t[1:] - t[:-1]
    return jnp.sum((y[:, :-1] + y[:, 1:]) * 0.5 * h[None, :], axis=1, keepdims=True)


def _ref_forward(x, params, structure, n_bases, grids):
    s0, s1 = structure["scalar"]
    cols = []
    for i, (a, b) in enumerate(structure["func"]):
        x_func = x[:, a:b]
        T = grids[i].reshape(-1, 1)
        for j in range(n_bases[i]):
            bv = _ref_ff(T, params["BL"][i][j]).reshape(1, -1)      # (1, J)
            cols.append(_ref_trapz(bv * x_func, grids[i]))          # (B, 1)
    final_inputs = jnp.concatenate(cols + [x[:, s0:s1]], axis=1)
    return _ref_ff(final_inputs, params["FF"])


# ---------------------------------------------------------------------------- driver
if __name__ == "__main__":
    # Module configuration (small, forward-consistent shapes)
    structure = {"func": [(0, 16), (16, 25)], "scalar": (25, 29)}
    n_bases = [3, 2]
    bases_hidden = [[8, 8], [8]]
    sub_hidden = [16, 16]
    num_classes = 1
    B = 4
    D = structure["scalar"][1]                          # 29 total columns

    key = jax.random.PRNGKey(0)

    # integration grids (np.linspace(0, 1, J)), column form for the kernel, trapz weights
    grids_1d, grids_col, tws = [], [], []
    for (a, b) in structure["func"]:
        J = b - a
        g = np.linspace(0.0, 1.0, J).astype(np.float32)
        grids_1d.append(jnp.asarray(g))
        grids_col.append(jnp.asarray(g).reshape(J, 1))
        tws.append(jnp.asarray(trapz_weights(g)).reshape(1, J))

    # parameters: basis networks BL[i][j] and subsequent network FF ("math" layout)
    params = {"BL": [], "FF": None}
    for i in range(len(structure["func"])):
        cov_bases = []
        for _ in range(n_bases[i]):
            p, key = init_feedforward(key, 1, bases_hidden[i], 1)
            cov_bases.append(p)
        params["BL"].append(cov_bases)
    scalar_covs = structure["scalar"][1] - structure["scalar"][0]
    params["FF"], key = init_feedforward(key, sum(n_bases) + scalar_covs, sub_hidden, num_classes)

    # kernel-layout parameters (stacked bases, pre-transposed out=1 layers)
    packed, ff_reduce_last = pack_params_for_kernel(params)

    # deterministic example input
    key, kx = jax.random.split(key)
    x = jax.random.normal(kx, (B, D), jnp.float32)

    fwd = jax.jit(partial(adafnn_forward,
                          structure=structure, n_bases=tuple(n_bases),
                          num_classes=num_classes, ff_reduce_last=ff_reduce_last))
    out = fwd(x, packed, grids_col, tws)
    out = jax.block_until_ready(out)

    ref = _ref_forward(x, params, structure, n_bases, grids_1d)
    # tolerance accounts for the EUP approx-reciprocal (+ Newton refinement) in LayerNorm
    np.testing.assert_allclose(np.asarray(out), np.asarray(ref), rtol=1e-3, atol=1e-3)

    assert out.shape == (B, num_classes)
    print("KERNEL_OK")
</pallas_src>

<mosaic_0001>
module attributes {stable_mosaic.version = 11 : i64} {
  func.func @kernel(%arg0: memref<16x1xf32, #tpu.memory_space<vmem>>, %arg1: memref<9x1xf32, #tpu.memory_space<vmem>>, %arg2: memref<3x1x8xf32, #tpu.memory_space<vmem>>, %arg3: memref<3x1x8xf32, #tpu.memory_space<vmem>>, %arg4: memref<3x8x8xf32, #tpu.memory_space<vmem>>, %arg5: memref<3x1x8xf32, #tpu.memory_space<vmem>>, %arg6: memref<3x1x8xf32, #tpu.memory_space<vmem>>, %arg7: memref<1x3xf32, #tpu.memory_space<vmem>>, %arg8: memref<3x1x8xf32, #tpu.memory_space<vmem>>, %arg9: memref<3x1x8xf32, #tpu.memory_space<vmem>>, %arg10: memref<3x1x8xf32, #tpu.memory_space<vmem>>, %arg11: memref<3x1x8xf32, #tpu.memory_space<vmem>>, %arg12: memref<2x1x8xf32, #tpu.memory_space<vmem>>, %arg13: memref<2x1x8xf32, #tpu.memory_space<vmem>>, %arg14: memref<2x1x8xf32, #tpu.memory_space<vmem>>, %arg15: memref<1x2xf32, #tpu.memory_space<vmem>>, %arg16: memref<2x1x8xf32, #tpu.memory_space<vmem>>, %arg17: memref<2x1x8xf32, #tpu.memory_space<vmem>>, %arg18: memref<9x16xf32, #tpu.memory_space<vmem>>, %arg19: memref<1x16xf32, #tpu.memory_space<vmem>>, %arg20: memref<16x16xf32, #tpu.memory_space<vmem>>, %arg21: memref<1x16xf32, #tpu.memory_space<vmem>>, %arg22: memref<1x16xf32, #tpu.memory_space<vmem>>, %arg23: memref<1x1xf32, #tpu.memory_space<vmem>>, %arg24: memref<1x16xf32, #tpu.memory_space<vmem>>, %arg25: memref<1x16xf32, #tpu.memory_space<vmem>>, %arg26: memref<1x16xf32, #tpu.memory_space<vmem>>, %arg27: memref<1x16xf32, #tpu.memory_space<vmem>>, %arg28: memref<1x16xf32, #tpu.memory_space<vmem>>, %arg29: memref<1x9xf32, #tpu.memory_space<vmem>>, %arg30: memref<8x29xf32, #tpu.memory_space<vmem>>, %arg31: memref<8x1xf32, #tpu.memory_space<vmem>>, %arg32: memref<16x3xf32, #tpu.memory_space<vmem>>, %arg33: memref<9x2xf32, #tpu.memory_space<vmem>>, %arg34: memref<8x9xf32, #tpu.memory_space<vmem>>) attributes {dimension_semantics = [], scalar_prefetch = 0 : i64, scratch_operands = 3 : i64, tpu.core_type = #tpu.core_type<tc>} {
    %c0 = arith.constant 0 : index
    %c0_0 = arith.constant 0 : index
    %0 = vector.load %arg30[%c0, %c0_0] : memref<8x29xf32, #tpu.memory_space<vmem>>, vector<8x29xf32>
    %c0_1 = arith.constant 0 : index
    %c0_2 = arith.constant 0 : index
    %1 = vector.load %arg0[%c0_1, %c0_2] : memref<16x1xf32, #tpu.memory_space<vmem>>, vector<16x1xf32>
    %c0_3 = arith.constant 0 : index
    %c0_4 = arith.constant 0 : index
    %2 = vector.load %arg28[%c0_3, %c0_4] : memref<1x16xf32, #tpu.memory_space<vmem>>, vector<1x16xf32>
    %c0_5 = arith.constant 0 : index
    %c0_6 = arith.constant 0 : index
    %c0_7 = arith.constant 0 : index
    %3 = vector.load %arg2[%c0_5, %c0_6, %c0_7] : memref<3x1x8xf32, #tpu.memory_space<vmem>>, vector<1x1x8xf32>
    %4 = vector.shape_cast %3 : vector<1x1x8xf32> to vector<1x8xf32>
    %c0_8 = arith.constant 0 : index
    %c0_9 = arith.constant 0 : index
    %c0_10 = arith.constant 0 : index
    %5 = vector.load %arg3[%c0_8, %c0_9, %c0_10] : memref<3x1x8xf32, #tpu.memory_space<vmem>>, vector<1x1x8xf32>
    %6 = vector.shape_cast %5 : vector<1x1x8xf32> to vector<1x8xf32>
    %7 = vector.broadcast %1 : vector<16x1xf32> to vector<16x8xf32>
    %8 = vector.broadcast %4 : vector<1x8xf32> to vector<16x8xf32>
    %9 = arith.mulf %7, %8 : vector<16x8xf32>
    %10 = vector.broadcast %6 : vector<1x8xf32> to vector<16x8xf32>
    %11 = arith.addf %9, %10 : vector<16x8xf32>
    %c0_11 = arith.constant 0 : index
    %c0_12 = arith.constant 0 : index
    %c0_13 = arith.constant 0 : index
    %12 = vector.load %arg8[%c0_11, %c0_12, %c0_13] : memref<3x1x8xf32, #tpu.memory_space<vmem>>, vector<1x1x8xf32>
    %13 = vector.shape_cast %12 : vector<1x1x8xf32> to vector<1x8xf32>
    %c0_14 = arith.constant 0 : index
    %c0_15 = arith.constant 0 : index
    %c0_16 = arith.constant 0 : index
    %14 = vector.load %arg9[%c0_14, %c0_15, %c0_16] : memref<3x1x8xf32, #tpu.memory_space<vmem>>, vector<1x1x8xf32>
    %15 = vector.shape_cast %14 : vector<1x1x8xf32> to vector<1x8xf32>
    %cst = arith.constant dense<0.000000e+00> : vector<16xf32>
    %16 = vector.multi_reduction <add>, %11, %cst [1] : vector<16x8xf32> to vector<16xf32>
    %17 = vector.shape_cast %16 : vector<16xf32> to vector<16x1xf32>
    %cst_17 = arith.constant 8.000000e+00 : f32
    %18 = vector.broadcast %cst_17 : f32 to vector<16x1xf32>
    %19 = arith.divf %17, %18 : vector<16x1xf32>
    %20 = vector.broadcast %19 : vector<16x1xf32> to vector<16x8xf32>
    %21 = arith.subf %11, %20 : vector<16x8xf32>
    %22 = arith.mulf %21, %21 : vector<16x8xf32>
    %cst_18 = arith.constant dense<0.000000e+00> : vector<16xf32>
    %23 = vector.multi_reduction <add>, %22, %cst_18 [1] : vector<16x8xf32> to vector<16xf32>
    %24 = vector.shape_cast %23 : vector<16xf32> to vector<16x1xf32>
    %cst_19 = arith.constant 0.142857149 : f32
    %25 = vector.broadcast %cst_19 : f32 to vector<16x1xf32>
    %26 = arith.mulf %24, %25 : vector<16x1xf32>
    %27 = math.sqrt %26 : vector<16x1xf32>
    %cst_20 = arith.constant 9.99999997E-7 : f32
    %28 = vector.broadcast %cst_20 : f32 to vector<16x1xf32>
    %29 = arith.addf %27, %28 : vector<16x1xf32>
    %30 = tpu.reciprocal %29 {approx = true} : vector<16x1xf32> -> vector<16x1xf32>
    %31 = arith.mulf %29, %30 : vector<16x1xf32>
    %cst_21 = arith.constant 2.000000e+00 : f32
    %32 = vector.broadcast %cst_21 : f32 to vector<16x1xf32>
    %33 = arith.subf %32, %31 : vector<16x1xf32>
    %34 = arith.mulf %30, %33 : vector<16x1xf32>
    %35 = vector.broadcast %19 : vector<16x1xf32> to vector<16x8xf32>
    %36 = arith.subf %11, %35 : vector<16x8xf32>
    %37 = vector.broadcast %34 : vector<16x1xf32> to vector<16x8xf32>
    %38 = arith.mulf %36, %37 : vector<16x8xf32>
    %39 = vector.broadcast %13 : vector<1x8xf32> to vector<16x8xf32>
    %40 = arith.mulf %38, %39 : vector<16x8xf32>
    %41 = vector.broadcast %15 : vector<1x8xf32> to vector<16x8xf32>
    %42 = arith.addf %40, %41 : vector<16x8xf32>
    %43 = arith.addf %11, %42 : vector<16x8xf32>
    %cst_22 = arith.constant 0.000000e+00 : f32
    %44 = vector.broadcast %cst_22 : f32 to vector<16x8xf32>
    %45 = arith.maximumf %43, %44 : vector<16x8xf32>
    %c0_23 = arith.constant 0 : index
    %c0_24 = arith.constant 0 : index
    %c0_25 = arith.constant 0 : index
    %46 = vector.load %arg4[%c0_23, %c0_24, %c0_25] : memref<3x8x8xf32, #tpu.memory_space<vmem>>, vector<1x8x8xf32>
    %47 = vector.shape_cast %46 : vector<1x8x8xf32> to vector<8x8xf32>
    %c0_26 = arith.constant 0 : index
    %c0_27 = arith.constant 0 : index
    %c0_28 = arith.constant 0 : index
    %48 = vector.load %arg5[%c0_26, %c0_27, %c0_28] : memref<3x1x8xf32, #tpu.memory_space<vmem>>, vector<1x1x8xf32>
    %49 = vector.shape_cast %48 : vector<1x1x8xf32> to vector<1x8xf32>
    %cst_29 = arith.constant dense<0.000000e+00> : vector<16x8xf32>
    %50 = tpu.matmul %45, %47, %cst_29 {dimension_numbers = #tpu.dot_dimension_numbers<[1], [0], [0], [1], [0, 0, 1, 1], [], []>} : vector<16x8xf32>, vector<8x8xf32>, vector<16x8xf32> -> vector<16x8xf32>
    %51 = vector.broadcast %49 : vector<1x8xf32> to vector<16x8xf32>
    %52 = arith.addf %50, %51 : vector<16x8xf32>
    %c0_30 = arith.constant 0 : index
    %c0_31 = arith.constant 0 : index
    %c0_32 = arith.constant 0 : index
    %53 = vector.load %arg10[%c0_30, %c0_31, %c0_32] : memref<3x1x8xf32, #tpu.memory_space<vmem>>, vector<1x1x8xf32>
    %54 = vector.shape_cast %53 : vector<1x1x8xf32> to vector<1x8xf32>
    %c0_33 = arith.constant 0 : index
    %c0_34 = arith.constant 0 : index
    %c0_35 = arith.constant 0 : index
    %55 = vector.load %arg11[%c0_33, %c0_34, %c0_35] : memref<3x1x8xf32, #tpu.memory_space<vmem>>, vector<1x1x8xf32>
    %56 = vector.shape_cast %55 : vector<1x1x8xf32> to vector<1x8xf32>
    %cst_36 = arith.constant dense<0.000000e+00> : vector<16xf32>
    %57 = vector.multi_reduction <add>, %52, %cst_36 [1] : vector<16x8xf32> to vector<16xf32>
    %58 = vector.shape_cast %57 : vector<16xf32> to vector<16x1xf32>
    %cst_37 = arith.constant 8.000000e+00 : f32
    %59 = vector.broadcast %cst_37 : f32 to vector<16x1xf32>
    %60 = arith.divf %58, %59 : vector<16x1xf32>
    %61 = vector.broadcast %60 : vector<16x1xf32> to vector<16x8xf32>
    %62 = arith.subf %52, %61 : vector<16x8xf32>
    %63 = arith.mulf %62, %62 : vector<16x8xf32>
    %cst_38 = arith.constant dense<0.000000e+00> : vector<16xf32>
    %64 = vector.multi_reduction <add>, %63, %cst_38 [1] : vector<16x8xf32> to vector<16xf32>
    %65 = vector.shape_cast %64 : vector<16xf32> to vector<16x1xf32>
    %cst_39 = arith.constant 0.142857149 : f32
    %66 = vector.broadcast %cst_39 : f32 to vector<16x1xf32>
    %67 = arith.mulf %65, %66 : vector<16x1xf32>
    %68 = math.sqrt %67 : vector<16x1xf32>
    %cst_40 = arith.constant 9.99999997E-7 : f32
    %69 = vector.broadcast %cst_40 : f32 to vector<16x1xf32>
    %70 = arith.addf %68, %69 : vector<16x1xf32>
    %71 = tpu.reciprocal %70 {approx = true} : vector<16x1xf32> -> vector<16x1xf32>
    %72 = arith.mulf %70, %71 : vector<16x1xf32>
    %cst_41 = arith.constant 2.000000e+00 : f32
    %73 = vector.broadcast %cst_41 : f32 to vector<16x1xf32>
    %74 = arith.subf %73, %72 : vector<16x1xf32>
    %75 = arith.mulf %71, %74 : vector<16x1xf32>
    %76 = vector.broadcast %60 : vector<16x1xf32> to vector<16x8xf32>
    %77 = arith.subf %52, %76 : vector<16x8xf32>
    %78 = vector.broadcast %75 : vector<16x1xf32> to vector<16x8xf32>
    %79 = arith.mulf %77, %78 : vector<16x8xf32>
    %80 = vector.broadcast %54 : vector<1x8xf32> to vector<16x8xf32>
    %81 = arith.mulf %79, %80 : vector<16x8xf32>
    %82 = vector.broadcast %56 : vector<1x8xf32> to vector<16x8xf32>
    %83 = arith.addf %81, %82 : vector<16x8xf32>
    %84 = arith.addf %52, %83 : vector<16x8xf32>
    %cst_42 = arith.constant 0.000000e+00 : f32
    %85 = vector.broadcast %cst_42 : f32 to vector<16x8xf32>
    %86 = arith.maximumf %84, %85 : vector<16x8xf32>
    %c0_43 = arith.constant 0 : index
    %c0_44 = arith.constant 0 : index
    %c0_45 = arith.constant 0 : index
    %87 = vector.load %arg6[%c0_43, %c0_44, %c0_45] : memref<3x1x8xf32, #tpu.memory_space<vmem>>, vector<1x1x8xf32>
    %88 = vector.shape_cast %87 : vector<1x1x8xf32> to vector<1x8xf32>
    %89 = vector.broadcast %88 : vector<1x8xf32> to vector<16x8xf32>
    %90 = arith.mulf %86, %89 : vector<16x8xf32>
    %cst_46 = arith.constant dense<0.000000e+00> : vector<16xf32>
    %91 = vector.multi_reduction <add>, %90, %cst_46 [1] : vector<16x8xf32> to vector<16xf32>
    %92 = vector.shape_cast %91 : vector<16xf32> to vector<16x1xf32>
    %c0_47 = arith.constant 0 : index
    %c0_48 = arith.constant 0 : index
    %93 = vector.load %arg32[%c0_47, %c0_48] : memref<16x3xf32, #tpu.memory_space<vmem>>, vector<16x1xf32>
    tpu.vector_store %arg32[%c0_47, %c0_48], %92 {strides = array<i32>} : memref<16x3xf32, #tpu.memory_space<vmem>>, vector<16x1xf32>,
    %c1 = arith.constant 1 : index
    %c0_49 = arith.constant 0 : index
    %c0_50 = arith.constant 0 : index
    %94 = vector.load %arg2[%c1, %c0_49, %c0_50] : memref<3x1x8xf32, #tpu.memory_space<vmem>>, vector<1x1x8xf32>
    %95 = vector.shape_cast %94 : vector<1x1x8xf32> to vector<1x8xf32>
    %c1_51 = arith.constant 1 : index
    %c0_52 = arith.constant 0 : index
    %c0_53 = arith.constant 0 : index
    %96 = vector.load %arg3[%c1_51, %c0_52, %c0_53] : memref<3x1x8xf32, #tpu.memory_space<vmem>>, vector<1x1x8xf32>
    %97 = vector.shape_cast %96 : vector<1x1x8xf32> to vector<1x8xf32>
    %98 = vector.broadcast %1 : vector<16x1xf32> to vector<16x8xf32>
    %99 = vector.broadcast %95 : vector<1x8xf32> to vector<16x8xf32>
    %100 = arith.mulf %98, %99 : vector<16x8xf32>
    %101 = vector.broadcast %97 : vector<1x8xf32> to vector<16x8xf32>
    %102 = arith.addf %100, %101 : vector<16x8xf32>
    %c1_54 = arith.constant 1 : index
    %c0_55 = arith.constant 0 : index
    %c0_56 = arith.constant 0 : index
    %103 = vector.load %arg8[%c1_54, %c0_55, %c0_56] : memref<3x1x8xf32, #tpu.memory_space<vmem>>, vector<1x1x8xf32>
    %104 = vector.shape_cast %103 : vector<1x1x8xf32> to vector<1x8xf32>
    %c1_57 = arith.constant 1 : index
    %c0_58 = arith.constant 0 : index
    %c0_59 = arith.constant 0 : index
    %105 = vector.load %arg9[%c1_57, %c0_58, %c0_59] : memref<3x1x8xf32, #tpu.memory_space<vmem>>, vector<1x1x8xf32>
    %106 = vector.shape_cast %105 : vector<1x1x8xf32> to vector<1x8xf32>
    %cst_60 = arith.constant dense<0.000000e+00> : vector<16xf32>
    %107 = vector.multi_reduction <add>, %102, %cst_60 [1] : vector<16x8xf32> to vector<16xf32>
    %108 = vector.shape_cast %107 : vector<16xf32> to vector<16x1xf32>
    %cst_61 = arith.constant 8.000000e+00 : f32
    %109 = vector.broadcast %cst_61 : f32 to vector<16x1xf32>
    %110 = arith.divf %108, %109 : vector<16x1xf32>
    %111 = vector.broadcast %110 : vector<16x1xf32> to vector<16x8xf32>
    %112 = arith.subf %102, %111 : vector<16x8xf32>
    %113 = arith.mulf %112, %112 : vector<16x8xf32>
    %cst_62 = arith.constant dense<0.000000e+00> : vector<16xf32>
    %114 = vector.multi_reduction <add>, %113, %cst_62 [1] : vector<16x8xf32> to vector<16xf32>
    %115 = vector.shape_cast %114 : vector<16xf32> to vector<16x1xf32>
    %cst_63 = arith.constant 0.142857149 : f32
    %116 = vector.broadcast %cst_63 : f32 to vector<16x1xf32>
    %117 = arith.mulf %115, %116 : vector<16x1xf32>
    %118 = math.sqrt %117 : vector<16x1xf32>
    %cst_64 = arith.constant 9.99999997E-7 : f32
    %119 = vector.broadcast %cst_64 : f32 to vector<16x1xf32>
    %120 = arith.addf %118, %119 : vector<16x1xf32>
    %121 = tpu.reciprocal %120 {approx = true} : vector<16x1xf32> -> vector<16x1xf32>
    %122 = arith.mulf %120, %121 : vector<16x1xf32>
    %cst_65 = arith.constant 2.000000e+00 : f32
    %123 = vector.broadcast %cst_65 : f32 to vector<16x1xf32>
    %124 = arith.subf %123, %122 : vector<16x1xf32>
    %125 = arith.mulf %121, %124 : vector<16x1xf32>
    %126 = vector.broadcast %110 : vector<16x1xf32> to vector<16x8xf32>
    %127 = arith.subf %102, %126 : vector<16x8xf32>
    %128 = vector.broadcast %125 : vector<16x1xf32> to vector<16x8xf32>
    %129 = arith.mulf %127, %128 : vector<16x8xf32>
    %130 = vector.broadcast %104 : vector<1x8xf32> to vector<16x8xf32>
    %131 = arith.mulf %129, %130 : vector<16x8xf32>
    %132 = vector.broadcast %106 : vector<1x8xf32> to vector<16x8xf32>
    %133 = arith.addf %131, %132 : vector<16x8xf32>
    %134 = arith.addf %102, %133 : vector<16x8xf32>
    %cst_66 = arith.constant 0.000000e+00 : f32
    %135 = vector.broadcast %cst_66 : f32 to vector<16x8xf32>
    %136 = arith.maximumf %134, %135 : vector<16x8xf32>
    %c1_67 = arith.constant 1 : index
    %c0_68 = arith.constant 0 : index
    %c0_69 = arith.constant 0 : index
    %137 = vector.load %arg4[%c1_67, %c0_68, %c0_69] : memref<3x8x8xf32, #tpu.memory_space<vmem>>, vector<1x8x8xf32>
    %138 = vector.shape_cast %137 : vector<1x8x8xf32> to vector<8x8xf32>
    %c1_70 = arith.constant 1 : index
    %c0_71 = arith.constant 0 : index
    %c0_72 = arith.constant 0 : index
    %139 = vector.load %arg5[%c1_70, %c0_71, %c0_72] : memref<3x1x8xf32, #tpu.memory_space<vmem>>, vector<1x1x8xf32>
    %140 = vector.shape_cast %139 : vector<1x1x8xf32> to vector<1x8xf32>
    %cst_73 = arith.constant dense<0.000000e+00> : vector<16x8xf32>
    %141 = tpu.matmul %136, %138, %cst_73 {dimension_numbers = #tpu.dot_dimension_numbers<[1], [0], [0], [1], [0, 0, 1, 1], [], []>} : vector<16x8xf32>, vector<8x8xf32>, vector<16x8xf32> -> vector<16x8xf32>
    %142 = vector.broadcast %140 : vector<1x8xf32> to vector<16x8xf32>
    %143 = arith.addf %141, %142 : vector<16x8xf32>
    %c1_74 = arith.constant 1 : index
    %c0_75 = arith.constant 0 : index
    %c0_76 = arith.constant 0 : index
    %144 = vector.load %arg10[%c1_74, %c0_75, %c0_76] : memref<3x1x8xf32, #tpu.memory_space<vmem>>, vector<1x1x8xf32>
    %145 = vector.shape_cast %144 : vector<1x1x8xf32> to vector<1x8xf32>
    %c1_77 = arith.constant 1 : index
    %c0_78 = arith.constant 0 : index
    %c0_79 = arith.constant 0 : index
    %146 = vector.load %arg11[%c1_77, %c0_78, %c0_79] : memref<3x1x8xf32, #tpu.memory_space<vmem>>, vector<1x1x8xf32>
    %147 = vector.shape_cast %146 : vector<1x1x8xf32> to vector<1x8xf32>
    %cst_80 = arith.constant dense<0.000000e+00> : vector<16xf32>
    %148 = vector.multi_reduction <add>, %143, %cst_80 [1] : vector<16x8xf32> to vector<16xf32>
    %149 = vector.shape_cast %148 : vector<16xf32> to vector<16x1xf32>
    %cst_81 = arith.constant 8.000000e+00 : f32
    %150 = vector.broadcast %cst_81 : f32 to vector<16x1xf32>
    %151 = arith.divf %149, %150 : vector<16x1xf32>
    %152 = vector.broadcast %151 : vector<16x1xf32> to vector<16x8xf32>
    %153 = arith.subf %143, %152 : vector<16x8xf32>
    %154 = arith.mulf %153, %153 : vector<16x8xf32>
    %cst_82 = arith.constant dense<0.000000e+00> : vector<16xf32>
    %155 = vector.multi_reduction <add>, %154, %cst_82 [1] : vector<16x8xf32> to vector<16xf32>
    %156 = vector.shape_cast %155 : vector<16xf32> to vector<16x1xf32>
    %cst_83 = arith.constant 0.142857149 : f32
    %157 = vector.broadcast %cst_83 : f32 to vector<16x1xf32>
    %158 = arith.mulf %156, %157 : vector<16x1xf32>
    %159 = math.sqrt %158 : vector<16x1xf32>
    %cst_84 = arith.constant 9.99999997E-7 : f32
    %160 = vector.broadcast %cst_84 : f32 to vector<16x1xf32>
    %161 = arith.addf %159, %160 : vector<16x1xf32>
    %162 = tpu.reciprocal %161 {approx = true} : vector<16x1xf32> -> vector<16x1xf32>
    %163 = arith.mulf %161, %162 : vector<16x1xf32>
    %cst_85 = arith.constant 2.000000e+00 : f32
    %164 = vector.broadcast %cst_85 : f32 to vector<16x1xf32>
    %165 = arith.subf %164, %163 : vector<16x1xf32>
    %166 = arith.mulf %162, %165 : vector<16x1xf32>
    %167 = vector.broadcast %151 : vector<16x1xf32> to vector<16x8xf32>
    %168 = arith.subf %143, %167 : vector<16x8xf32>
    %169 = vector.broadcast %166 : vector<16x1xf32> to vector<16x8xf32>
    %170 = arith.mulf %168, %169 : vector<16x8xf32>
    %171 = vector.broadcast %145 : vector<1x8xf32> to vector<16x8xf32>
    %172 = arith.mulf %170, %171 : vector<16x8xf32>
    %173 = vector.broadcast %147 : vector<1x8xf32> to vector<16x8xf32>
    %174 = arith.addf %172, %173 : vector<16x8xf32>
    %175 = arith.addf %143, %174 : vector<16x8xf32>
    %cst_86 = arith.constant 0.000000e+00 : f32
    %176 = vector.broadcast %cst_86 : f32 to vector<16x8xf32>
    %177 = arith.maximumf %175, %176 : vector<16x8xf32>
    %c1_87 = arith.constant 1 : index
    %c0_88 = arith.constant 0 : index
    %c0_89 = arith.constant 0 : index
    %178 = vector.load %arg6[%c1_87, %c0_88, %c0_89] : memref<3x1x8xf32, #tpu.memory_space<vmem>>, vector<1x1x8xf32>
    %179 = vector.shape_cast %178 : vector<1x1x8xf32> to vector<1x8xf32>
    %180 = vector.broadcast %179 : vector<1x8xf32> to vector<16x8xf32>
    %181 = arith.mulf %177, %180 : vector<16x8xf32>
    %cst_90 = arith.constant dense<0.000000e+00> : vector<16xf32>
    %182 = vector.multi_reduction <add>, %181, %cst_90 [1] : vector<16x8xf32> to vector<16xf32>
    %183 = vector.shape_cast %182 : vector<16xf32> to vector<16x1xf32>
    %c0_91 = arith.constant 0 : index
    %c1_92 = arith.constant 1 : index
    %184 = vector.load %arg32[%c0_91, %c1_92] : memref<16x3xf32, #tpu.memory_space<vmem>>, vector<16x1xf32>
    tpu.vector_store %arg32[%c0_91, %c1_92], %183 {strides = array<i32>} : memref<16x3xf32, #tpu.memory_space<vmem>>, vector<16x1xf32>,
    %c2 = arith.constant 2 : index
    %c0_93 = arith.constant 0 : index
    %c0_94 = arith.constant 0 : index
    %185 = vector.load %arg2[%c2, %c0_93, %c0_94] : memref<3x1x8xf32, #tpu.memory_space<vmem>>, vector<1x1x8xf32>
    %186 = vector.shape_cast %185 : vector<1x1x8xf32> to vector<1x8xf32>
    %c2_95 = arith.constant 2 : index
    %c0_96 = arith.constant 0 : index
    %c0_97 = arith.constant 0 : index
    %187 = vector.load %arg3[%c2_95, %c0_96, %c0_97] : memref<3x1x8xf32, #tpu.memory_space<vmem>>, vector<1x1x8xf32>
    %188 = vector.shape_cast %187 : vector<1x1x8xf32> to vector<1x8xf32>
    %189 = vector.broadcast %1 : vector<16x1xf32> to vector<16x8xf32>
    %190 = vector.broadcast %186 : vector<1x8xf32> to vector<16x8xf32>
    %191 = arith.mulf %189, %190 : vector<16x8xf32>
    %192 = vector.broadcast %188 : vector<1x8xf32> to vector<16x8xf32>
    %193 = arith.addf %191, %192 : vector<16x8xf32>
    %c2_98 = arith.constant 2 : index
    %c0_99 = arith.constant 0 : index
    %c0_100 = arith.constant 0 : index
    %194 = vector.load %arg8[%c2_98, %c0_99, %c0_100] : memref<3x1x8xf32, #tpu.memory_space<vmem>>, vector<1x1x8xf32>
    %195 = vector.shape_cast %194 : vector<1x1x8xf32> to vector<1x8xf32>
    %c2_101 = arith.constant 2 : index
    %c0_102 = arith.constant 0 : index
    %c0_103 = arith.constant 0 : index
    %196 = vector.load %arg9[%c2_101, %c0_102, %c0_103] : memref<3x1x8xf32, #tpu.memory_space<vmem>>, vector<1x1x8xf32>
    %197 = vector.shape_cast %196 : vector<1x1x8xf32> to vector<1x8xf32>
    %cst_104 = arith.constant dense<0.000000e+00> : vector<16xf32>
    %198 = vector.multi_reduction <add>, %193, %cst_104 [1] : vector<16x8xf32> to vector<16xf32>
    %199 = vector.shape_cast %198 : vector<16xf32> to vector<16x1xf32>
    %cst_105 = arith.constant 8.000000e+00 : f32
    %200 = vector.broadcast %cst_105 : f32 to vector<16x1xf32>
    %201 = arith.divf %199, %200 : vector<16x1xf32>
    %202 = vector.broadcast %201 : vector<16x1xf32> to vector<16x8xf32>
    %203 = arith.subf %193, %202 : vector<16x8xf32>
    %204 = arith.mulf %203, %203 : vector<16x8xf32>
    %cst_106 = arith.constant dense<0.000000e+00> : vector<16xf32>
    %205 = vector.multi_reduction <add>, %204, %cst_106 [1] : vector<16x8xf32> to vector<16xf32>
    %206 = vector.shape_cast %205 : vector<16xf32> to vector<16x1xf32>
    %cst_107 = arith.constant 0.142857149 : f32
    %207 = vector.broadcast %cst_107 : f32 to vector<16x1xf32>
    %208 = arith.mulf %206, %207 : vector<16x1xf32>
    %209 = math.sqrt %208 : vector<16x1xf32>
    %cst_108 = arith.constant 9.99999997E-7 : f32
    %210 = vector.broadcast %cst_108 : f32 to vector<16x1xf32>
    %211 = arith.addf %209, %210 : vector<16x1xf32>
    %212 = tpu.reciprocal %211 {approx = true} : vector<16x1xf32> -> vector<16x1xf32>
    %213 = arith.mulf %211, %212 : vector<16x1xf32>
    %cst_109 = arith.constant 2.000000e+00 : f32
    %214 = vector.broadcast %cst_109 : f32 to vector<16x1xf32>
    %215 = arith.subf %214, %213 : vector<16x1xf32>
    %216 = arith.mulf %212, %215 : vector<16x1xf32>
    %217 = vector.broadcast %201 : vector<16x1xf32> to vector<16x8xf32>
    %218 = arith.subf %193, %217 : vector<16x8xf32>
    %219 = vector.broadcast %216 : vector<16x1xf32> to vector<16x8xf32>
    %220 = arith.mulf %218, %219 : vector<16x8xf32>
    %221 = vector.broadcast %195 : vector<1x8xf32> to vector<16x8xf32>
    %222 = arith.mulf %220, %221 : vector<16x8xf32>
    %223 = vector.broadcast %197 : vector<1x8xf32> to vector<16x8xf32>
    %224 = arith.addf %222, %223 : vector<16x8xf32>
    %225 = arith.addf %193, %224 : vector<16x8xf32>
    %cst_110 = arith.constant 0.000000e+00 : f32
    %226 = vector.broadcast %cst_110 : f32 to vector<16x8xf32>
    %227 = arith.maximumf %225, %226 : vector<16x8xf32>
    %c2_111 = arith.constant 2 : index
    %c0_112 = arith.constant 0 : index
    %c0_113 = arith.constant 0 : index
    %228 = vector.load %arg4[%c2_111, %c0_112, %c0_113] : memref<3x8x8xf32, #tpu.memory_space<vmem>>, vector<1x8x8xf32>
    %229 = vector.shape_cast %228 : vector<1x8x8xf32> to vector<8x8xf32>
    %c2_114 = arith.constant 2 : index
    %c0_115 = arith.constant 0 : index
    %c0_116 = arith.constant 0 : index
    %230 = vector.load %arg5[%c2_114, %c0_115, %c0_116] : memref<3x1x8xf32, #tpu.memory_space<vmem>>, vector<1x1x8xf32>
    %231 = vector.shape_cast %230 : vector<1x1x8xf32> to vector<1x8xf32>
    %cst_117 = arith.constant dense<0.000000e+00> : vector<16x8xf32>
    %232 = tpu.matmul %227, %229, %cst_117 {dimension_numbers = #tpu.dot_dimension_numbers<[1], [0], [0], [1], [0, 0, 1, 1], [], []>} : vector<16x8xf32>, vector<8x8xf32>, vector<16x8xf32> -> vector<16x8xf32>
    %233 = vector.broadcast %231 : vector<1x8xf32> to vector<16x8xf32>
    %234 = arith.addf %232, %233 : vector<16x8xf32>
    %c2_118 = arith.constant 2 : index
    %c0_119 = arith.constant 0 : index
    %c0_120 = arith.constant 0 : index
    %235 = vector.load %arg10[%c2_118, %c0_119, %c0_120] : memref<3x1x8xf32, #tpu.memory_space<vmem>>, vector<1x1x8xf32>
    %236 = vector.shape_cast %235 : vector<1x1x8xf32> to vector<1x8xf32>
    %c2_121 = arith.constant 2 : index
    %c0_122 = arith.constant 0 : index
    %c0_123 = arith.constant 0 : index
    %237 = vector.load %arg11[%c2_121, %c0_122, %c0_123] : memref<3x1x8xf32, #tpu.memory_space<vmem>>, vector<1x1x8xf32>
    %238 = vector.shape_cast %237 : vector<1x1x8xf32> to vector<1x8xf32>
    %cst_124 = arith.constant dense<0.000000e+00> : vector<16xf32>
    %239 = vector.multi_reduction <add>, %234, %cst_124 [1] : vector<16x8xf32> to vector<16xf32>
    %240 = vector.shape_cast %239 : vector<16xf32> to vector<16x1xf32>
    %cst_125 = arith.constant 8.000000e+00 : f32
    %241 = vector.broadcast %cst_125 : f32 to vector<16x1xf32>
    %242 = arith.divf %240, %241 : vector<16x1xf32>
    %243 = vector.broadcast %242 : vector<16x1xf32> to vector<16x8xf32>
    %244 = arith.subf %234, %243 : vector<16x8xf32>
    %245 = arith.mulf %244, %244 : vector<16x8xf32>
    %cst_126 = arith.constant dense<0.000000e+00> : vector<16xf32>
    %246 = vector.multi_reduction <add>, %245, %cst_126 [1] : vector<16x8xf32> to vector<16xf32>
    %247 = vector.shape_cast %246 : vector<16xf32> to vector<16x1xf32>
    %cst_127 = arith.constant 0.142857149 : f32
    %248 = vector.broadcast %cst_127 : f32 to vector<16x1xf32>
    %249 = arith.mulf %247, %248 : vector<16x1xf32>
    %250 = math.sqrt %249 : vector<16x1xf32>
    %cst_128 = arith.constant 9.99999997E-7 : f32
    %251 = vector.broadcast %cst_128 : f32 to vector<16x1xf32>
    %252 = arith.addf %250, %251 : vector<16x1xf32>
    %253 = tpu.reciprocal %252 {approx = true} : vector<16x1xf32> -> vector<16x1xf32>
    %254 = arith.mulf %252, %253 : vector<16x1xf32>
    %cst_129 = arith.constant 2.000000e+00 : f32
    %255 = vector.broadcast %cst_129 : f32 to vector<16x1xf32>
    %256 = arith.subf %255, %254 : vector<16x1xf32>
    %257 = arith.mulf %253, %256 : vector<16x1xf32>
    %258 = vector.broadcast %242 : vector<16x1xf32> to vector<16x8xf32>
    %259 = arith.subf %234, %258 : vector<16x8xf32>
    %260 = vector.broadcast %257 : vector<16x1xf32> to vector<16x8xf32>
    %261 = arith.mulf %259, %260 : vector<16x8xf32>
    %262 = vector.broadcast %236 : vector<1x8xf32> to vector<16x8xf32>
    %263 = arith.mulf %261, %262 : vector<16x8xf32>
    %264 = vector.broadcast %238 : vector<1x8xf32> to vector<16x8xf32>
    %265 = arith.addf %263, %264 : vector<16x8xf32>
    %266 = arith.addf %234, %265 : vector<16x8xf32>
    %cst_130 = arith.constant 0.000000e+00 : f32
    %267 = vector.broadcast %cst_130 : f32 to vector<16x8xf32>
    %268 = arith.maximumf %266, %267 : vector<16x8xf32>
    %c2_131 = arith.constant 2 : index
    %c0_132 = arith.constant 0 : index
    %c0_133 = arith.constant 0 : index
    %269 = vector.load %arg6[%c2_131, %c0_132, %c0_133] : memref<3x1x8xf32, #tpu.memory_space<vmem>>, vector<1x1x8xf32>
    %270 = vector.shape_cast %269 : vector<1x1x8xf32> to vector<1x8xf32>
    %271 = vector.broadcast %270 : vector<1x8xf32> to vector<16x8xf32>
    %272 = arith.mulf %268, %271 : vector<16x8xf32>
    %cst_134 = arith.constant dense<0.000000e+00> : vector<16xf32>
    %273 = vector.multi_reduction <add>, %272, %cst_134 [1] : vector<16x8xf32> to vector<16xf32>
    %274 = vector.shape_cast %273 : vector<16xf32> to vector<16x1xf32>
    %c0_135 = arith.constant 0 : index
    %c2_136 = arith.constant 2 : index
    %275 = vector.load %arg32[%c0_135, %c2_136] : memref<16x3xf32, #tpu.memory_space<vmem>>, vector<16x1xf32>
    tpu.vector_store %arg32[%c0_135, %c2_136], %274 {strides = array<i32>} : memref<16x3xf32, #tpu.memory_space<vmem>>, vector<16x1xf32>,
    %c0_137 = arith.constant 0 : index
    %c0_138 = arith.constant 0 : index
    %276 = vector.load %arg32[%c0_137, %c0_138] : memref<16x3xf32, #tpu.memory_space<vmem>>, vector<16x3xf32>
    %c0_139 = arith.constant 0 : index
    %c0_140 = arith.constant 0 : index
    %277 = vector.load %arg7[%c0_139, %c0_140] : memref<1x3xf32, #tpu.memory_space<vmem>>, vector<1x3xf32>
    %278 = vector.broadcast %277 : vector<1x3xf32> to vector<16x3xf32>
    %279 = arith.addf %276, %278 : vector<16x3xf32>
    %280 = vector.extract_strided_slice %0 {offsets = [0, 0], sizes = [8, 16], strides = [1, 1]} : vector<8x29xf32> to vector<8x16xf32>
    %281 = vector.broadcast %2 : vector<1x16xf32> to vector<8x16xf32>
    %282 = arith.mulf %280, %281 : vector<8x16xf32>
    %cst_141 = arith.constant dense<0.000000e+00> : vector<8x3xf32>
    %283 = tpu.matmul %282, %279, %cst_141 {dimension_numbers = #tpu.dot_dimension_numbers<[1], [0], [0], [1], [0, 0, 1, 1], [], []>} : vector<8x16xf32>, vector<16x3xf32>, vector<8x3xf32> -> vector<8x3xf32>
    %c0_142 = arith.constant 0 : index
    %c0_143 = arith.constant 0 : index
    %284 = vector.load %arg34[%c0_142, %c0_143] : memref<8x9xf32, #tpu.memory_space<vmem>>, vector<8x3xf32>
    tpu.vector_store %arg34[%c0_142, %c0_143], %283 {strides = array<i32>} : memref<8x9xf32, #tpu.memory_space<vmem>>, vector<8x3xf32>,
    %c0_144 = arith.constant 0 : index
    %c0_145 = arith.constant 0 : index
    %285 = vector.load %arg1[%c0_144, %c0_145] : memref<9x1xf32, #tpu.memory_space<vmem>>, vector<9x1xf32>
    %c0_146 = arith.constant 0 : index
    %c0_147 = arith.constant 0 : index
    %286 = vector.load %arg29[%c0_146, %c0_147] : memref<1x9xf32, #tpu.memory_space<vmem>>, vector<1x9xf32>
    %c0_148 = arith.constant 0 : index
    %c0_149 = arith.constant 0 : index
    %c0_150 = arith.constant 0 : index
    %287 = vector.load %arg12[%c0_148, %c0_149, %c0_150] : memref<2x1x8xf32, #tpu.memory_space<vmem>>, vector<1x1x8xf32>
    %288 = vector.shape_cast %287 : vector<1x1x8xf32> to vector<1x8xf32>
    %c0_151 = arith.constant 0 : index
    %c0_152 = arith.constant 0 : index
    %c0_153 = arith.constant 0 : index
    %289 = vector.load %arg13[%c0_151, %c0_152, %c0_153] : memref<2x1x8xf32, #tpu.memory_space<vmem>>, vector<1x1x8xf32>
    %290 = vector.shape_cast %289 : vector<1x1x8xf32> to vector<1x8xf32>
    %291 = vector.broadcast %285 : vector<9x1xf32> to vector<9x8xf32>
    %292 = vector.broadcast %288 : vector<1x8xf32> to vector<9x8xf32>
    %293 = arith.mulf %291, %292 : vector<9x8xf32>
    %294 = vector.broadcast %290 : vector<1x8xf32> to vector<9x8xf32>
    %295 = arith.addf %293, %294 : vector<9x8xf32>
    %c0_154 = arith.constant 0 : index
    %c0_155 = arith.constant 0 : index
    %c0_156 = arith.constant 0 : index
    %296 = vector.load %arg16[%c0_154, %c0_155, %c0_156] : memref<2x1x8xf32, #tpu.memory_space<vmem>>, vector<1x1x8xf32>
    %297 = vector.shape_cast %296 : vector<1x1x8xf32> to vector<1x8xf32>
    %c0_157 = arith.constant 0 : index
    %c0_158 = arith.constant 0 : index
    %c0_159 = arith.constant 0 : index
    %298 = vector.load %arg17[%c0_157, %c0_158, %c0_159] : memref<2x1x8xf32, #tpu.memory_space<vmem>>, vector<1x1x8xf32>
    %299 = vector.shape_cast %298 : vector<1x1x8xf32> to vector<1x8xf32>
    %cst_160 = arith.constant dense<0.000000e+00> : vector<9xf32>
    %300 = vector.multi_reduction <add>, %295, %cst_160 [1] : vector<9x8xf32> to vector<9xf32>
    %301 = vector.shape_cast %300 : vector<9xf32> to vector<9x1xf32>
    %cst_161 = arith.constant 8.000000e+00 : f32
    %302 = vector.broadcast %cst_161 : f32 to vector<9x1xf32>
    %303 = arith.divf %301, %302 : vector<9x1xf32>
    %304 = vector.broadcast %303 : vector<9x1xf32> to vector<9x8xf32>
    %305 = arith.subf %295, %304 : vector<9x8xf32>
    %306 = arith.mulf %305, %305 : vector<9x8xf32>
    %cst_162 = arith.constant dense<0.000000e+00> : vector<9xf32>
    %307 = vector.multi_reduction <add>, %306, %cst_162 [1] : vector<9x8xf32> to vector<9xf32>
    %308 = vector.shape_cast %307 : vector<9xf32> to vector<9x1xf32>
    %cst_163 = arith.constant 0.142857149 : f32
    %309 = vector.broadcast %cst_163 : f32 to vector<9x1xf32>
    %310 = arith.mulf %308, %309 : vector<9x1xf32>
    %311 = math.sqrt %310 : vector<9x1xf32>
    %cst_164 = arith.constant 9.99999997E-7 : f32
    %312 = vector.broadcast %cst_164 : f32 to vector<9x1xf32>
    %313 = arith.addf %311, %312 : vector<9x1xf32>
    %314 = tpu.reciprocal %313 {approx = true} : vector<9x1xf32> -> vector<9x1xf32>
    %315 = arith.mulf %313, %314 : vector<9x1xf32>
    %cst_165 = arith.constant 2.000000e+00 : f32
    %316 = vector.broadcast %cst_165 : f32 to vector<9x1xf32>
    %317 = arith.subf %316, %315 : vector<9x1xf32>
    %318 = arith.mulf %314, %317 : vector<9x1xf32>
    %319 = vector.broadcast %303 : vector<9x1xf32> to vector<9x8xf32>
    %320 = arith.subf %295, %319 : vector<9x8xf32>
    %321 = vector.broadcast %318 : vector<9x1xf32> to vector<9x8xf32>
    %322 = arith.mulf %320, %321 : vector<9x8xf32>
    %323 = vector.broadcast %297 : vector<1x8xf32> to vector<9x8xf32>
    %324 = arith.mulf %322, %323 : vector<9x8xf32>
    %325 = vector.broadcast %299 : vector<1x8xf32> to vector<9x8xf32>
    %326 = arith.addf %324, %325 : vector<9x8xf32>
    %327 = arith.addf %295, %326 : vector<9x8xf32>
    %cst_166 = arith.constant 0.000000e+00 : f32
    %328 = vector.broadcast %cst_166 : f32 to vector<9x8xf32>
    %329 = arith.maximumf %327, %328 : vector<9x8xf32>
    %c0_167 = arith.constant 0 : index
    %c0_168 = arith.constant 0 : index
    %c0_169 = arith.constant 0 : index
    %330 = vector.load %arg14[%c0_167, %c0_168, %c0_169] : memref<2x1x8xf32, #tpu.memory_space<vmem>>, vector<1x1x8xf32>
    %331 = vector.shape_cast %330 : vector<1x1x8xf32> to vector<1x8xf32>
    %332 = vector.broadcast %331 : vector<1x8xf32> to vector<9x8xf32>
    %333 = arith.mulf %329, %332 : vector<9x8xf32>
    %cst_170 = arith.constant dense<0.000000e+00> : vector<9xf32>
    %334 = vector.multi_reduction <add>, %333, %cst_170 [1] : vector<9x8xf32> to vector<9xf32>
    %335 = vector.shape_cast %334 : vector<9xf32> to vector<9x1xf32>
    %c0_171 = arith.constant 0 : index
    %c0_172 = arith.constant 0 : index
    %336 = vector.load %arg33[%c0_171, %c0_172] : memref<9x2xf32, #tpu.memory_space<vmem>>, vector<9x1xf32>
    tpu.vector_store %arg33[%c0_171, %c0_172], %335 {strides = array<i32>} : memref<9x2xf32, #tpu.memory_space<vmem>>, vector<9x1xf32>,
    %c1_173 = arith.constant 1 : index
    %c0_174 = arith.constant 0 : index
    %c0_175 = arith.constant 0 : index
    %337 = vector.load %arg12[%c1_173, %c0_174, %c0_175] : memref<2x1x8xf32, #tpu.memory_space<vmem>>, vector<1x1x8xf32>
    %338 = vector.shape_cast %337 : vector<1x1x8xf32> to vector<1x8xf32>
    %c1_176 = arith.constant 1 : index
    %c0_177 = arith.constant 0 : index
    %c0_178 = arith.constant 0 : index
    %339 = vector.load %arg13[%c1_176, %c0_177, %c0_178] : memref<2x1x8xf32, #tpu.memory_space<vmem>>, vector<1x1x8xf32>
    %340 = vector.shape_cast %339 : vector<1x1x8xf32> to vector<1x8xf32>
    %341 = vector.broadcast %285 : vector<9x1xf32> to vector<9x8xf32>
    %342 = vector.broadcast %338 : vector<1x8xf32> to vector<9x8xf32>
    %343 = arith.mulf %341, %342 : vector<9x8xf32>
    %344 = vector.broadcast %340 : vector<1x8xf32> to vector<9x8xf32>
    %345 = arith.addf %343, %344 : vector<9x8xf32>
    %c1_179 = arith.constant 1 : index
    %c0_180 = arith.constant 0 : index
    %c0_181 = arith.constant 0 : index
    %346 = vector.load %arg16[%c1_179, %c0_180, %c0_181] : memref<2x1x8xf32, #tpu.memory_space<vmem>>, vector<1x1x8xf32>
    %347 = vector.shape_cast %346 : vector<1x1x8xf32> to vector<1x8xf32>
    %c1_182 = arith.constant 1 : index
    %c0_183 = arith.constant 0 : index
    %c0_184 = arith.constant 0 : index
    %348 = vector.load %arg17[%c1_182, %c0_183, %c0_184] : memref<2x1x8xf32, #tpu.memory_space<vmem>>, vector<1x1x8xf32>
    %349 = vector.shape_cast %348 : vector<1x1x8xf32> to vector<1x8xf32>
    %cst_185 = arith.constant dense<0.000000e+00> : vector<9xf32>
    %350 = vector.multi_reduction <add>, %345, %cst_185 [1] : vector<9x8xf32> to vector<9xf32>
    %351 = vector.shape_cast %350 : vector<9xf32> to vector<9x1xf32>
    %cst_186 = arith.constant 8.000000e+00 : f32
    %352 = vector.broadcast %cst_186 : f32 to vector<9x1xf32>
    %353 = arith.divf %351, %352 : vector<9x1xf32>
    %354 = vector.broadcast %353 : vector<9x1xf32> to vector<9x8xf32>
    %355 = arith.subf %345, %354 : vector<9x8xf32>
    %356 = arith.mulf %355, %355 : vector<9x8xf32>
    %cst_187 = arith.constant dense<0.000000e+00> : vector<9xf32>
    %357 = vector.multi_reduction <add>, %356, %cst_187 [1] : vector<9x8xf32> to vector<9xf32>
    %358 = vector.shape_cast %357 : vector<9xf32> to vector<9x1xf32>
    %cst_188 = arith.constant 0.142857149 : f32
    %359 = vector.broadcast %cst_188 : f32 to vector<9x1xf32>
    %360 = arith.mulf %358, %359 : vector<9x1xf32>
    %361 = math.sqrt %360 : vector<9x1xf32>
    %cst_189 = arith.constant 9.99999997E-7 : f32
    %362 = vector.broadcast %cst_189 : f32 to vector<9x1xf32>
    %363 = arith.addf %361, %362 : vector<9x1xf32>
    %364 = tpu.reciprocal %363 {approx = true} : vector<9x1xf32> -> vector<9x1xf32>
    %365 = arith.mulf %363, %364 : vector<9x1xf32>
    %cst_190 = arith.constant 2.000000e+00 : f32
    %366 = vector.broadcast %cst_190 : f32 to vector<9x1xf32>
    %367 = arith.subf %366, %365 : vector<9x1xf32>
    %368 = arith.mulf %364, %367 : vector<9x1xf32>
    %369 = vector.broadcast %353 : vector<9x1xf32> to vector<9x8xf32>
    %370 = arith.subf %345, %369 : vector<9x8xf32>
    %371 = vector.broadcast %368 : vector<9x1xf32> to vector<9x8xf32>
    %372 = arith.mulf %370, %371 : vector<9x8xf32>
    %373 = vector.broadcast %347 : vector<1x8xf32> to vector<9x8xf32>
    %374 = arith.mulf %372, %373 : vector<9x8xf32>
    %375 = vector.broadcast %349 : vector<1x8xf32> to vector<9x8xf32>
    %376 = arith.addf %374, %375 : vector<9x8xf32>
    %377 = arith.addf %345, %376 : vector<9x8xf32>
    %cst_191 = arith.constant 0.000000e+00 : f32
    %378 = vector.broadcast %cst_191 : f32 to vector<9x8xf32>
    %379 = arith.maximumf %377, %378 : vector<9x8xf32>
    %c1_192 = arith.constant 1 : index
    %c0_193 = arith.constant 0 : index
    %c0_194 = arith.constant 0 : index
    %380 = vector.load %arg14[%c1_192, %c0_193, %c0_194] : memref<2x1x8xf32, #tpu.memory_space<vmem>>, vector<1x1x8xf32>
    %381 = vector.shape_cast %380 : vector<1x1x8xf32> to vector<1x8xf32>
    %382 = vector.broadcast %381 : vector<1x8xf32> to vector<9x8xf32>
    %383 = arith.mulf %379, %382 : vector<9x8xf32>
    %cst_195 = arith.constant dense<0.000000e+00> : vector<9xf32>
    %384 = vector.multi_reduction <add>, %383, %cst_195 [1] : vector<9x8xf32> to vector<9xf32>
    %385 = vector.shape_cast %384 : vector<9xf32> to vector<9x1xf32>
    %c0_196 = arith.constant 0 : index
    %c1_197 = arith.constant 1 : index
    %386 = vector.load %arg33[%c0_196, %c1_197] : memref<9x2xf32, #tpu.memory_space<vmem>>, vector<9x1xf32>
    tpu.vector_store %arg33[%c0_196, %c1_197], %385 {strides = array<i32>} : memref<9x2xf32, #tpu.memory_space<vmem>>, vector<9x1xf32>,
    %c0_198 = arith.constant 0 : index
    %c0_199 = arith.constant 0 : index
    %387 = vector.load %arg33[%c0_198, %c0_199] : memref<9x2xf32, #tpu.memory_space<vmem>>, vector<9x2xf32>
    %c0_200 = arith.constant 0 : index
    %c0_201 = arith.constant 0 : index
    %388 = vector.load %arg15[%c0_200, %c0_201] : memref<1x2xf32, #tpu.memory_space<vmem>>, vector<1x2xf32>
    %389 = vector.broadcast %388 : vector<1x2xf32> to vector<9x2xf32>
    %390 = arith.addf %387, %389 : vector<9x2xf32>
    %391 = vector.extract_strided_slice %0 {offsets = [0, 16], sizes = [8, 9], strides = [1, 1]} : vector<8x29xf32> to vector<8x9xf32>
    %392 = vector.broadcast %286 : vector<1x9xf32> to vector<8x9xf32>
    %393 = arith.mulf %391, %392 : vector<8x9xf32>
    %cst_202 = arith.constant dense<0.000000e+00> : vector<8x2xf32>
    %394 = tpu.matmul %393, %390, %cst_202 {dimension_numbers = #tpu.dot_dimension_numbers<[1], [0], [0], [1], [0, 0, 1, 1], [], []>} : vector<8x9xf32>, vector<9x2xf32>, vector<8x2xf32> -> vector<8x2xf32>
    %c0_203 = arith.constant 0 : index
    %c3 = arith.constant 3 : index
    %395 = vector.load %arg34[%c0_203, %c3] : memref<8x9xf32, #tpu.memory_space<vmem>>, vector<8x2xf32>
    tpu.vector_store %arg34[%c0_203, %c3], %394 {strides = array<i32>} : memref<8x9xf32, #tpu.memory_space<vmem>>, vector<8x2xf32>,
    %396 = vector.extract_strided_slice %0 {offsets = [0, 25], sizes = [8, 4], strides = [1, 1]} : vector<8x29xf32> to vector<8x4xf32>
    %c0_204 = arith.constant 0 : index
    %c5 = arith.constant 5 : index
    %397 = vector.load %arg34[%c0_204, %c5] : memref<8x9xf32, #tpu.memory_space<vmem>>, vector<8x4xf32>
    tpu.vector_store %arg34[%c0_204, %c5], %396 {strides = array<i32>} : memref<8x9xf32, #tpu.memory_space<vmem>>, vector<8x4xf32>,
    %c0_205 = arith.constant 0 : index
    %c0_206 = arith.constant 0 : index
    %398 = vector.load %arg34[%c0_205, %c0_206] : memref<8x9xf32, #tpu.memory_space<vmem>>, vector<8x9xf32>
    %c0_207 = arith.constant 0 : index
    %c0_208 = arith.constant 0 : index
    %399 = vector.load %arg18[%c0_207, %c0_208] : memref<9x16xf32, #tpu.memory_space<vmem>>, vector<9x16xf32>
    %cst_209 = arith.constant dense<0.000000e+00> : vector<8x16xf32>
    %400 = tpu.matmul %398, %399, %cst_209 {dimension_numbers = #tpu.dot_dimension_numbers<[1], [0], [0], [1], [0, 0, 1, 1], [], []>} : vector<8x9xf32>, vector<9x16xf32>, vector<8x16xf32> -> vector<8x16xf32>
    %c0_210 = arith.constant 0 : index
    %c0_211 = arith.constant 0 : index
    %401 = vector.load %arg19[%c0_210, %c0_211] : memref<1x16xf32, #tpu.memory_space<vmem>>, vector<1x16xf32>
    %402 = vector.broadcast %401 : vector<1x16xf32> to vector<8x16xf32>
    %403 = arith.addf %400, %402 : vector<8x16xf32>
    %c0_212 = arith.constant 0 : index
    %c0_213 = arith.constant 0 : index
    %404 = vector.load %arg24[%c0_212, %c0_213] : memref<1x16xf32, #tpu.memory_space<vmem>>, vector<1x16xf32>
    %c0_214 = arith.constant 0 : index
    %c0_215 = arith.constant 0 : index
    %405 = vector.load %arg25[%c0_214, %c0_215] : memref<1x16xf32, #tpu.memory_space<vmem>>, vector<1x16xf32>
    %cst_216 = arith.constant dense<0.000000e+00> : vector<8xf32>
    %406 = vector.multi_reduction <add>, %403, %cst_216 [1] : vector<8x16xf32> to vector<8xf32>
    %407 = vector.shape_cast %406 : vector<8xf32> to vector<8x1xf32>
    %cst_217 = arith.constant 1.600000e+01 : f32
    %408 = vector.broadcast %cst_217 : f32 to vector<8x1xf32>
    %409 = arith.divf %407, %408 : vector<8x1xf32>
    %410 = vector.broadcast %409 : vector<8x1xf32> to vector<8x16xf32>
    %411 = arith.subf %403, %410 : vector<8x16xf32>
    %412 = arith.mulf %411, %411 : vector<8x16xf32>
    %cst_218 = arith.constant dense<0.000000e+00> : vector<8xf32>
    %413 = vector.multi_reduction <add>, %412, %cst_218 [1] : vector<8x16xf32> to vector<8xf32>
    %414 = vector.shape_cast %413 : vector<8xf32> to vector<8x1xf32>
    %cst_219 = arith.constant 0.0666666701 : f32
    %415 = vector.broadcast %cst_219 : f32 to vector<8x1xf32>
    %416 = arith.mulf %414, %415 : vector<8x1xf32>
    %417 = math.sqrt %416 : vector<8x1xf32>
    %cst_220 = arith.constant 9.99999997E-7 : f32
    %418 = vector.broadcast %cst_220 : f32 to vector<8x1xf32>
    %419 = arith.addf %417, %418 : vector<8x1xf32>
    %420 = tpu.reciprocal %419 {approx = true} : vector<8x1xf32> -> vector<8x1xf32>
    %421 = arith.mulf %419, %420 : vector<8x1xf32>
    %cst_221 = arith.constant 2.000000e+00 : f32
    %422 = vector.broadcast %cst_221 : f32 to vector<8x1xf32>
    %423 = arith.subf %422, %421 : vector<8x1xf32>
    %424 = arith.mulf %420, %423 : vector<8x1xf32>
    %425 = vector.broadcast %409 : vector<8x1xf32> to vector<8x16xf32>
    %426 = arith.subf %403, %425 : vector<8x16xf32>
    %427 = vector.broadcast %424 : vector<8x1xf32> to vector<8x16xf32>
    %428 = arith.mulf %426, %427 : vector<8x16xf32>
    %429 = vector.broadcast %404 : vector<1x16xf32> to vector<8x16xf32>
    %430 = arith.mulf %428, %429 : vector<8x16xf32>
    %431 = vector.broadcast %405 : vector<1x16xf32> to vector<8x16xf32>
    %432 = arith.addf %430, %431 : vector<8x16xf32>
    %433 = arith.addf %403, %432 : vector<8x16xf32>
    %cst_222 = arith.constant 0.000000e+00 : f32
    %434 = vector.broadcast %cst_222 : f32 to vector<8x16xf32>
    %435 = arith.maximumf %433, %434 : vector<8x16xf32>
    %c0_223 = arith.constant 0 : index
    %c0_224 = arith.constant 0 : index
    %436 = vector.load %arg20[%c0_223, %c0_224] : memref<16x16xf32, #tpu.memory_space<vmem>>, vector<16x16xf32>
    %cst_225 = arith.constant dense<0.000000e+00> : vector<8x16xf32>
    %437 = tpu.matmul %435, %436, %cst_225 {dimension_numbers = #tpu.dot_dimension_numbers<[1], [0], [0], [1], [0, 0, 1, 1], [], []>} : vector<8x16xf32>, vector<16x16xf32>, vector<8x16xf32> -> vector<8x16xf32>
    %c0_226 = arith.constant 0 : index
    %c0_227 = arith.constant 0 : index
    %438 = vector.load %arg21[%c0_226, %c0_227] : memref<1x16xf32, #tpu.memory_space<vmem>>, vector<1x16xf32>
    %439 = vector.broadcast %438 : vector<1x16xf32> to vector<8x16xf32>
    %440 = arith.addf %437, %439 : vector<8x16xf32>
    %c0_228 = arith.constant 0 : index
    %c0_229 = arith.constant 0 : index
    %441 = vector.load %arg26[%c0_228, %c0_229] : memref<1x16xf32, #tpu.memory_space<vmem>>, vector<1x16xf32>
    %c0_230 = arith.constant 0 : index
    %c0_231 = arith.constant 0 : index
    %442 = vector.load %arg27[%c0_230, %c0_231] : memref<1x16xf32, #tpu.memory_space<vmem>>, vector<1x16xf32>
    %cst_232 = arith.constant dense<0.000000e+00> : vector<8xf32>
    %443 = vector.multi_reduction <add>, %440, %cst_232 [1] : vector<8x16xf32> to vector<8xf32>
    %444 = vector.shape_cast %443 : vector<8xf32> to vector<8x1xf32>
    %cst_233 = arith.constant 1.600000e+01 : f32
    %445 = vector.broadcast %cst_233 : f32 to vector<8x1xf32>
    %446 = arith.divf %444, %445 : vector<8x1xf32>
    %447 = vector.broadcast %446 : vector<8x1xf32> to vector<8x16xf32>
    %448 = arith.subf %440, %447 : vector<8x16xf32>
    %449 = arith.mulf %448, %448 : vector<8x16xf32>
    %cst_234 = arith.constant dense<0.000000e+00> : vector<8xf32>
    %450 = vector.multi_reduction <add>, %449, %cst_234 [1] : vector<8x16xf32> to vector<8xf32>
    %451 = vector.shape_cast %450 : vector<8xf32> to vector<8x1xf32>
    %cst_235 = arith.constant 0.0666666701 : f32
    %452 = vector.broadcast %cst_235 : f32 to vector<8x1xf32>
    %453 = arith.mulf %451, %452 : vector<8x1xf32>
    %454 = math.sqrt %453 : vector<8x1xf32>
    %cst_236 = arith.constant 9.99999997E-7 : f32
    %455 = vector.broadcast %cst_236 : f32 to vector<8x1xf32>
    %456 = arith.addf %454, %455 : vector<8x1xf32>
    %457 = tpu.reciprocal %456 {approx = true} : vector<8x1xf32> -> vector<8x1xf32>
    %458 = arith.mulf %456, %457 : vector<8x1xf32>
    %cst_237 = arith.constant 2.000000e+00 : f32
    %459 = vector.broadcast %cst_237 : f32 to vector<8x1xf32>
    %460 = arith.subf %459, %458 : vector<8x1xf32>
    %461 = arith.mulf %457, %460 : vector<8x1xf32>
    %462 = vector.broadcast %446 : vector<8x1xf32> to vector<8x16xf32>
    %463 = arith.subf %440, %462 : vector<8x16xf32>
    %464 = vector.broadcast %461 : vector<8x1xf32> to vector<8x16xf32>
    %465 = arith.mulf %463, %464 : vector<8x16xf32>
    %466 = vector.broadcast %441 : vector<1x16xf32> to vector<8x16xf32>
    %467 = arith.mulf %465, %466 : vector<8x16xf32>
    %468 = vector.broadcast %442 : vector<1x16xf32> to vector<8x16xf32>
    %469 = arith.addf %467, %468 : vector<8x16xf32>
    %470 = arith.addf %440, %469 : vector<8x16xf32>
    %cst_238 = arith.constant 0.000000e+00 : f32
    %471 = vector.broadcast %cst_238 : f32 to vector<8x16xf32>
    %472 = arith.maximumf %470, %471 : vector<8x16xf32>
    %c0_239 = arith.constant 0 : index
    %c0_240 = arith.constant 0 : index
    %473 = vector.load %arg22[%c0_239, %c0_240] : memref<1x16xf32, #tpu.memory_space<vmem>>, vector<1x16xf32>
    %474 = vector.broadcast %473 : vector<1x16xf32> to vector<8x16xf32>
    %475 = arith.mulf %472, %474 : vector<8x16xf32>
    %cst_241 = arith.constant dense<0.000000e+00> : vector<8xf32>
    %476 = vector.multi_reduction <add>, %475, %cst_241 [1] : vector<8x16xf32> to vector<8xf32>
    %477 = vector.shape_cast %476 : vector<8xf32> to vector<8x1xf32>
    %c0_242 = arith.constant 0 : index
    %c0_243 = arith.constant 0 : index
    %478 = vector.load %arg23[%c0_242, %c0_243] : memref<1x1xf32, #tpu.memory_space<vmem>>, vector<1x1xf32>
    %479 = vector.broadcast %478 : vector<1x1xf32> to vector<8x1xf32>
    %480 = arith.addf %477, %479 : vector<8x1xf32>
    %c0_244 = arith.constant 0 : index
    %c0_245 = arith.constant 0 : index
    %481 = vector.load %arg31[%c0_244, %c0_245] : memref<8x1xf32, #tpu.memory_space<vmem>>, vector<8x1xf32>
    tpu.vector_store %arg31[%c0_244, %c0_245], %480 {strides = array<i32>} : memref<8x1xf32, #tpu.memory_space<vmem>>, vector<8x1xf32>,
    return
  }
}

</mosaic_0001>

<llo_original>
// kernel: adafnn_forward.1
$region0: #{adafnn_forward.1}
  #allocation0 [shape = 'u32[]', space=smem, size = 0x4, offset = 0x4, fixed_abs, tag = 'smem constant byte address 0x4 - core index']
  #allocation1 [shape = 'u32[144,128]{1,0:T(1,128)}', space=vmem, size = 0x12000, scoped, tag = 'internal scratch']
  #allocation2 [shape = 'f32[16,3]{1,0:T(8,128)}', space=vmem, size = 0x2000, scoped, tag = 'scratch operand']
  #allocation3 [shape = 'f32[9,2]{1,0:T(8,128)}', space=vmem, size = 0x2000, scoped, tag = 'scratch operand']
  #allocation4 [shape = 'f32[8,9]{1,0:T(8,128)}', space=vmem, size = 0x1000, scoped, tag = 'scratch operand']
  #allocation5 [shape = 'f32[1,1]{1,0:T(1,128)S(1)}', space=vmem, size = 0x200, scoped, tag = 'scoped memory for adafnn_forward.1']
  %s0 = inlined_call_operand.smem [shape: u32[32], index: -1, kind: input, shape index: {}]
  %s1 = sld [smem:[%s0]]
  %s2 = scalar_lea.smem %s0, 1
  %s3 = sld [smem:[%s2]]
  %s4 = scalar_lea.smem %s0, 2
  %s5 = sld [smem:[%s4]]
  %s6 = scalar_lea.smem %s0, 3
  %s7 = sld [smem:[%s6]]
  %s8 = scalar_lea.smem %s0, 4
  %s9 = sld [smem:[%s8]]
  %s10 = scalar_lea.smem %s0, 5
  %s11 = sld [smem:[%s10]]
  %s12 = scalar_lea.smem %s0, 6
  %s13 = sld [smem:[%s12]]
  %s14 = scalar_lea.smem %s0, 7
  %s15 = sld [smem:[%s14]]
  %s16 = scalar_lea.smem %s0, 8
  %s17 = sld [smem:[%s16]]
  %s18 = scalar_lea.smem %s0, 9
  %s19 = sld [smem:[%s18]]
  %s20 = scalar_lea.smem %s0, 10
  %s21 = sld [smem:[%s20]]
  %s22 = scalar_lea.smem %s0, 11
  %s23 = sld [smem:[%s22]]
  %s24 = scalar_lea.smem %s0, 12
  %s25 = sld [smem:[%s24]]
  %s26 = scalar_lea.smem %s0, 13
  %s27 = sld [smem:[%s26]]
  %s28 = scalar_lea.smem %s0, 14
  %s29 = sld [smem:[%s28]]
  %s30 = scalar_lea.smem %s0, 15
  %s31 = sld [smem:[%s30]]
  %s32 = scalar_lea.smem %s0, 16
  %s33 = sld [smem:[%s32]]
  %s34 = scalar_lea.smem %s0, 17
  %s35 = sld [smem:[%s34]]
  %s36 = scalar_lea.smem %s0, 18
  %s37 = sld [smem:[%s36]]
  %s38 = scalar_lea.smem %s0, 19
  %s39 = sld [smem:[%s38]]
  %s40 = scalar_lea.smem %s0, 20
  %s41 = sld [smem:[%s40]]
  %s42 = scalar_lea.smem %s0, 21
  %s43 = sld [smem:[%s42]]
  %s44 = scalar_lea.smem %s0, 22
  %s45 = sld [smem:[%s44]]
  %s46 = scalar_lea.smem %s0, 23
  %s47 = sld [smem:[%s46]]
  %s48 = scalar_lea.smem %s0, 24
  %s49 = sld [smem:[%s48]]
  %s50 = scalar_lea.smem %s0, 25
  %s51 = sld [smem:[%s50]]
  %s52 = scalar_lea.smem %s0, 26
  %s53 = sld [smem:[%s52]]
  %s54 = scalar_lea.smem %s0, 27
  %s55 = sld [smem:[%s54]]
  %s56 = scalar_lea.smem %s0, 28
  %s57 = sld [smem:[%s56]]
  %s58 = scalar_lea.smem %s0, 29
  %s59 = sld [smem:[%s58]]
  %s60 = scalar_lea.smem %s0, 30
  %s61 = sld [smem:[%s60]]
  %s62 = scalar_lea.smem %s0, 31
  %s63 = sld [smem:[%s62]]
  %s64 = sld [smem:[#allocation0]]
  $region146: #{adafnn_forward.1} parent=0
    _
  %s66 = ssub.s32 1, %s64
  %s67 = scalar_select 0, %s66, %s64
  %v68 = vstv %s47
  %69 = vst [vmem:[#allocation5] sm:$0x1] %v68
  $region1: #{adafnn_forward.1} parent=0
    #allocation6 [shape = 'u8[1536]{0}', space=vmem, size = 0x800, scoped, tag = 'input window, operand 2, single buffered']
    #allocation7 [shape = 's32[1]{0}', space=sflag, size = 0x4, scoped, tag = 'scoped memory for adafnn_forward.1']
    #allocation8 [shape = 'u8[1536]{0}', space=vmem, size = 0x800, scoped, tag = 'input window, operand 3, single buffered']
    #allocation9 [shape = 's32[1]{0}', space=sflag, size = 0x4, scoped, tag = 'scoped memory for adafnn_forward.1']
    #allocation10 [shape = 'u8[512]{0}', space=vmem, size = 0x400, scoped, tag = 'input window, operand 7, single buffered']
    %70 = vsyncpa [#allocation7], 0
    %71 = vsyncpa [#allocation9], 0
    // Predicated region
    $region2: #{adafnn_forward.1} parent=1 // pred_check
      _
    $region3: #{adafnn_forward.1} parent=1 // pred_check_branch
      %73 = sbr.rel (0) target = $region5
    $region4: #{adafnn_forward.1} parent=1 // pred_region
      _
    $region5: #{adafnn_forward.1} parent=1 // pred_fallthru
      _
    // Predicated region
    $region6: #{adafnn_forward.1} parent=1 // pred_check
      _
    $region7: #{adafnn_forward.1} parent=1 // pred_check_branch
      %75 = sbr.rel (0) target = $region9
    $region8: #{adafnn_forward.1} parent=1 // pred_region
      _
    $region9: #{adafnn_forward.1} parent=1 // pred_fallthru
      _
    // Predicated region
    $region10: #{adafnn_forward.1} parent=1 // pred_check
      _
    $region11: #{adafnn_forward.1} parent=1 // pred_check_branch
      %77 = sbr.rel (0) target = $region13
    $region12: #{adafnn_forward.1} parent=1 // pred_region
      %s79 = ssub.s32 48, 48
      %80 = vsyncadd [#allocation7], %s79
      %s81 = sshll.u32 [#allocation6], 4
      %s82 = int_to_ptr.vmem [resolvable:$true] %s81
      %87 = dma.hbm_to_vmem [thread:$0]  %s5, 48, %s82, [#allocation7], 16, 16, 1
    $region13: #{adafnn_forward.1} parent=1 // pred_fallthru
      _
    // Predicated region
    $region14: #{adafnn_forward.1} parent=1 // pred_check
      _
    $region15: #{adafnn_forward.1} parent=1 // pred_check_branch
      %89 = sbr.rel (0) target = $region17
    $region16: #{adafnn_forward.1} parent=1 // pred_region
      %s91 = ssub.s32 48, 48
      %92 = vsyncadd [#allocation9], %s91
      %s93 = sshll.u32 [#allocation8], 4
      %s94 = int_to_ptr.vmem [resolvable:$true] %s93
      %99 = dma.hbm_to_vmem [thread:$0]  %s7, 48, %s94, [#allocation9], 16, 16, 1
    $region17: #{adafnn_forward.1} parent=1 // pred_fallthru
      _
    // Predicated region
    $region18: #{adafnn_forward.1} parent=1 // pred_check
      _
    $region19: #{adafnn_forward.1} parent=1 // pred_check_branch
      %101 = sbr.rel (0) target = $region21
    $region20: #{adafnn_forward.1} parent=1 // pred_region
      _
    $region21: #{adafnn_forward.1} parent=1 // pred_fallthru
      _
    // Predicated region
    $region22: #{adafnn_forward.1} parent=1 // pred_check
      _
    $region23: #{adafnn_forward.1} parent=1 // pred_check_branch
      %103 = sbr.rel (0) target = $region25
    $region24: #{adafnn_forward.1} parent=1 // pred_region
      _
    $region25: #{adafnn_forward.1} parent=1 // pred_fallthru
      _
    // Predicated region
    $region26: #{adafnn_forward.1} parent=1 // pred_check
      _
    $region27: #{adafnn_forward.1} parent=1 // pred_check_branch
      %105 = sbr.rel (0) target = $region29
    $region28: #{adafnn_forward.1} parent=1 // pred_region
      _
    $region29: #{adafnn_forward.1} parent=1 // pred_fallthru
      _
    // Predicated region
    $region30: #{adafnn_forward.1} parent=1 // pred_check
      _
    $region31: #{adafnn_forward.1} parent=1 // pred_check_branch
      %107 = sbr.rel (0) target = $region33
    $region32: #{adafnn_forward.1} parent=1 // pred_region
      %s109 = ssub.s32 16, 16
      %110 = vsyncadd [#allocation9], %s109
      %s112 = sshll.u32 [#allocation10], 4
      %s113 = int_to_ptr.vmem [resolvable:$true] %s112
      %115 = dma.hbm_to_vmem [thread:$0]  %s15, 16, %s113, [#allocation9]
    $region33: #{adafnn_forward.1} parent=1 // pred_fallthru
      _
    // Predicated region
    $region34: #{adafnn_forward.1} parent=1 // pred_check
      _
    $region35: #{adafnn_forward.1} parent=1 // pred_check_branch
      %117 = sbr.rel (0) target = $region37
    $region36: #{adafnn_forward.1} parent=1 // pred_region
      _
    $region37: #{adafnn_forward.1} parent=1 // pred_fallthru
      _
    // Predicated region
    $region38: #{adafnn_forward.1} parent=1 // pred_check
      _
    $region39: #{adafnn_forward.1} parent=1 // pred_check_branch
      %119 = sbr.rel (0) target = $region41
    $region40: #{adafnn_forward.1} parent=1 // pred_region
      _
    $region41: #{adafnn_forward.1} parent=1 // pred_fallthru
      _
    // Predicated region
    $region42: #{adafnn_forward.1} parent=1 // pred_check
      _
    $region43: #{adafnn_forward.1} parent=1 // pred_check_branch
      %121 = sbr.rel (0) target = $region45
    $region44: #{adafnn_forward.1} parent=1 // pred_region
      _
    $region45: #{adafnn_forward.1} parent=1 // pred_fallthru
      _
    // Predicated region
    $region46: #{adafnn_forward.1} parent=1 // pred_check
      _
    $region47: #{adafnn_forward.1} parent=1 // pred_check_branch
      %123 = sbr.rel (0) target = $region49
    $region48: #{adafnn_forward.1} parent=1 // pred_region
      _
    $region49: #{adafnn_forward.1} parent=1 // pred_fallthru
      _
    // Predicated region
    $region50: #{adafnn_forward.1} parent=1 // pred_check
      _
    $region51: #{adafnn_forward.1} parent=1 // pred_check_branch
      %125 = sbr.rel (0) target = $region53
    $region52: #{adafnn_forward.1} parent=1 // pred_region
      _
    $region53: #{adafnn_forward.1} parent=1 // pred_fallthru
      _
    // Predicated region
    $region54: #{adafnn_forward.1} parent=1 // pred_check
      _
    $region55: #{adafnn_forward.1} parent=1 // pred_check_branch
      %127 = sbr.rel (0) target = $region57
    $region56: #{adafnn_forward.1} parent=1 // pred_region
      _
    $region57: #{adafnn_forward.1} parent=1 // pred_fallthru
      _
    // Predicated region
    $region58: #{adafnn_forward.1} parent=1 // pred_check
      _
    $region59: #{adafnn_forward.1} parent=1 // pred_check_branch
      %129 = sbr.rel (0) target = $region61
    $region60: #{adafnn_forward.1} parent=1 // pred_region
      _
    $region61: #{adafnn_forward.1} parent=1 // pred_fallthru
      _
    // Predicated region
    $region62: #{adafnn_forward.1} parent=1 // pred_check
      _
    $region63: #{adafnn_forward.1} parent=1 // pred_check_branch
      %131 = sbr.rel (0) target = $region65
    $region64: #{adafnn_forward.1} parent=1 // pred_region
      _
    $region65: #{adafnn_forward.1} parent=1 // pred_fallthru
      _
    // Predicated region
    $region66: #{adafnn_forward.1} parent=1 // pred_check
      _
    $region67: #{adafnn_forward.1} parent=1 // pred_check_branch
      %133 = sbr.rel (0) target = $region69
    $region68: #{adafnn_forward.1} parent=1 // pred_region
      _
    $region69: #{adafnn_forward.1} parent=1 // pred_fallthru
      _
    // Predicated region
    $region70: #{adafnn_forward.1} parent=1 // pred_check
      _
    $region71: #{adafnn_forward.1} parent=1 // pred_check_branch
      %135 = sbr.rel (0) target = $region73
    $region72: #{adafnn_forward.1} parent=1 // pred_region
      _
    $region73: #{adafnn_forward.1} parent=1 // pred_fallthru
      _
    // Predicated region
    $region74: #{adafnn_forward.1} parent=1 // pred_check
      _
    $region75: #{adafnn_forward.1} parent=1 // pred_check_branch
      %137 = sbr.rel (0) target = $region77
    $region76: #{adafnn_forward.1} parent=1 // pred_region
      _
    $region77: #{adafnn_forward.1} parent=1 // pred_fallthru
      _
    // Predicated region
    $region78: #{adafnn_forward.1} parent=1 // pred_check
      _
    $region79: #{adafnn_forward.1} parent=1 // pred_check_branch
      %139 = sbr.rel (0) target = $region81
    $region80: #{adafnn_forward.1} parent=1 // pred_region
      _
    $region81: #{adafnn_forward.1} parent=1 // pred_fallthru
      _
    // Predicated region
    $region82: #{adafnn_forward.1} parent=1 // pred_check
      _
    $region83: #{adafnn_forward.1} parent=1 // pred_check_branch
      %141 = sbr.rel (0) target = $region85
    $region84: #{adafnn_forward.1} parent=1 // pred_region
      _
    $region85: #{adafnn_forward.1} parent=1 // pred_fallthru
      _
    // Predicated region
    $region86: #{adafnn_forward.1} parent=1 // pred_check
      _
    $region87: #{adafnn_forward.1} parent=1 // pred_check_branch
      %143 = sbr.rel (0) target = $region89
    $region88: #{adafnn_forward.1} parent=1 // pred_region
      _
    $region89: #{adafnn_forward.1} parent=1 // pred_fallthru
      _
    // Predicated region
    $region90: #{adafnn_forward.1} parent=1 // pred_check
      _
    $region91: #{adafnn_forward.1} parent=1 // pred_check_branch
      %145 = sbr.rel (0) target = $region93
    $region92: #{adafnn_forward.1} parent=1 // pred_region
      _
    $region93: #{adafnn_forward.1} parent=1 // pred_fallthru
      _
    // Predicated region
    $region94: #{adafnn_forward.1} parent=1 // pred_check
      _
    $region95: #{adafnn_forward.1} parent=1 // pred_check_branch
      %147 = sbr.rel (0) target = $region97
    $region96: #{adafnn_forward.1} parent=1 // pred_region
      _
    $region97: #{adafnn_forward.1} parent=1 // pred_fallthru
      _
    // Predicated region
    $region98: #{adafnn_forward.1} parent=1 // pred_check
      _
    $region99: #{adafnn_forward.1} parent=1 // pred_check_branch
      %149 = sbr.rel (0) target = $region101
    $region100: #{adafnn_forward.1} parent=1 // pred_region
      _
    $region101: #{adafnn_forward.1} parent=1 // pred_fallthru
      _
    // Predicated region
    $region102: #{adafnn_forward.1} parent=1 // pred_check
      _
    $region103: #{adafnn_forward.1} parent=1 // pred_check_branch
      %151 = sbr.rel (0) target = $region105
    $region104: #{adafnn_forward.1} parent=1 // pred_region
      _
    $region105: #{adafnn_forward.1} parent=1 // pred_fallthru
      _
    // Predicated region
    $region106: #{adafnn_forward.1} parent=1 // pred_check
      _
    $region107: #{adafnn_forward.1} parent=1 // pred_check_branch
      %153 = sbr.rel (0) target = $region109
    $region108: #{adafnn_forward.1} parent=1 // pred_region
      _
    $region109: #{adafnn_forward.1} parent=1 // pred_fallthru
      _
    // Predicated region
    $region110: #{adafnn_forward.1} parent=1 // pred_check
      _
    $region111: #{adafnn_forward.1} parent=1 // pred_check_branch
      %155 = sbr.rel (0) target = $region113
    $region112: #{adafnn_forward.1} parent=1 // pred_region
      _
    $region113: #{adafnn_forward.1} parent=1 // pred_fallthru
      _
    // Predicated region
    $region114: #{adafnn_forward.1} parent=1 // pred_check
      _
    $region115: #{adafnn_forward.1} parent=1 // pred_check_branch
      %157 = sbr.rel (0) target = $region117
    $region116: #{adafnn_forward.1} parent=1 // pred_region
      _
    $region117: #{adafnn_forward.1} parent=1 // pred_fallthru
      _
    // Predicated region
    $region118: #{adafnn_forward.1} parent=1 // pred_check
      _
    $region119: #{adafnn_forward.1} parent=1 // pred_check_branch
      %159 = sbr.rel (0) target = $region121
    $region120: #{adafnn_forward.1} parent=1 // pred_region
      _
    $region121: #{adafnn_forward.1} parent=1 // pred_fallthru
      _
    // Predicated region
    $region122: #{adafnn_forward.1} parent=1 // pred_check
      _
    $region123: #{adafnn_forward.1} parent=1 // pred_check_branch
      %161 = sbr.rel (0) target = $region125
    $region124: #{adafnn_forward.1} parent=1 // pred_region
      _
    $region125: #{adafnn_forward.1} parent=1 // pred_fallthru
      _
    // Predicated region
    $region126: #{adafnn_forward.1} parent=1 // pred_check
      _
    $region127: #{adafnn_forward.1} parent=1 // pred_check_branch
      %163 = sbr.rel (0) target = $region129
    $region128: #{adafnn_forward.1} parent=1 // pred_region
      %164 = dma.done [#allocation7], 48
    $region129: #{adafnn_forward.1} parent=1 // pred_fallthru
      _
    // Predicated region
    $region130: #{adafnn_forward.1} parent=1 // pred_check
      _
    $region131: #{adafnn_forward.1} parent=1 // pred_check_branch
      %166 = sbr.rel (0) target = $region133
    $region132: #{adafnn_forward.1} parent=1 // pred_region
      %167 = dma.done [#allocation9], 48
    $region133: #{adafnn_forward.1} parent=1 // pred_fallthru
      _
    // Predicated region
    $region134: #{adafnn_forward.1} parent=1 // pred_check
      _
    $region135: #{adafnn_forward.1} parent=1 // pred_check_branch
      %169 = sbr.rel (0) target = $region137
    $region136: #{adafnn_forward.1} parent=1 // pred_region
      %170 = dma.done [#allocation9], 16
    $region137: #{adafnn_forward.1} parent=1 // pred_fallthru
      _
    %v171 = vld [vmem:[%s61] sm:$0xff]
    %v172 = vld [vmem:[%s1] sm:$0xff]
    %v173 = vld [vmem:[%s1 + $0x8] sm:$0xff]
    %v174 = vld [vmem:[%s57] sm:$0x1]
    %v175 = vld [vmem:[#allocation6] sm:$0x1]
    %v176 = vld [vmem:[#allocation8] sm:$0x1]
    %178 = vset.pattern.permute.xlu0 0
    %179 = vperm.xlu0 %178, %v172
    %v180 = vpop.permute.xlu0 %179
    %183 = vset.pattern.permute.xlu0 0
    %184 = vperm.xlu0 %183, %v173
    %v185 = vpop.permute.xlu0 %184
    %v188 = vlaneseq
    %v189 = vshrl.u32 %v188, 7
    %v190 = vsub.s32 0, %v189
    %v191 = vrot.slane %v175, %v190
    %v193 = vmul.f32 %v180, %v191
    %v194 = vmul.f32 %v185, %v191
    %v196 = vlaneseq
    %v197 = vshrl.u32 %v196, 7
    %v198 = vsub.s32 0, %v197
    %v199 = vrot.slane %v176, %v198
    %v201 = vadd.f32 %v193, %v199
    %v202 = vadd.f32 %v194, %v199
    %v203 = vld [vmem:[%s17] sm:$0x1]
    %v204 = vld [vmem:[%s19] sm:$0x1]
    %vm205 = vcmask 64512
    %v206 = vsel %vm205, %v201, 0.0
    %207 = vadd.xlane.f32.xlu0 %v206
    %v208 = vpop.xlane.xlu0 %207
    %v209 = vsel %vm205, %v202, 0.0
    %210 = vadd.xlane.f32.xlu0 %v209
    %v211 = vpop.xlane.xlu0 %210
    %v212 = vrcp.pop 8.0
    %v213 = vmul.f32 %v208, %v212
    %v214 = vmul.f32 %v211, %v212
    %v215 = vsub.f32 %v201, %v213
    %v216 = vsub.f32 %v202, %v214
    %v217 = vmul.f32 %v215, %v215
    %v218 = vmul.f32 %v216, %v216
    %v219 = vsel %vm205, %v217, 0.0
    %220 = vadd.xlane.f32.xlu0 %v219
    %v221 = vpop.xlane.xlu0 %220
    %v222 = vsel %vm205, %v218, 0.0
    %223 = vadd.xlane.f32.xlu0 %v222
    %v224 = vpop.xlane.xlu0 %223
    %v225 = vmul.f32 %v221, 0.14285715
    %v226 = vmul.f32 %v224, 0.14285715
    %v227 = vrsqrt.pop %v225
    %v228 = vmul.f32 %v225, %v227
    %vm229 = vcmp.eq.f32.partialorder %v225, inf
    %v230 = vsel %vm229, %v225, %v228
    %vm231 = vcmp.eq.f32.partialorder %v225, 0.0
    %v232 = vand.u32 %v225, 2147483648
    %v233 = vsel %vm231, %v232, %v230
    %v234 = vrsqrt.pop %v226
    %v235 = vmul.f32 %v226, %v234
    %vm236 = vcmp.eq.f32.partialorder %v226, inf
    %v237 = vsel %vm236, %v226, %v235
    %vm238 = vcmp.eq.f32.partialorder %v226, 0.0
    %v239 = vand.u32 %v226, 2147483648
    %v240 = vsel %vm238, %v239, %v237
    %v241 = vadd.f32 %v233, 1e-06
    %v242 = vadd.f32 %v240, 1e-06
    %v243 = vrcp.pop %v241
    %v244 = vrcp.pop %v242
    %v245 = vmul.f32 %v241, %v243
    %v246 = vmul.f32 %v242, %v244
    %v247 = vsub.f32 2.0, %v245
    %v248 = vsub.f32 2.0, %v246
    %v249 = vmul.f32 %v243, %v247
    %v250 = vmul.f32 %v244, %v248
    %v251 = vmul.f32 %v215, %v249
    %v252 = vmul.f32 %v216, %v250
    %v254 = vlaneseq
    %v255 = vshrl.u32 %v254, 7
    %v256 = vsub.s32 0, %v255
    %v257 = vrot.slane %v203, %v256
    %v259 = vmul.f32 %v251, %v257
    %v260 = vmul.f32 %v252, %v257
    %v262 = vlaneseq
    %v263 = vshrl.u32 %v262, 7
    %v264 = vsub.s32 0, %v263
    %v265 = vrot.slane %v204, %v264
    %v267 = vadd.f32 %v259, %v265
    %v268 = vadd.f32 %v260, %v265
    %v269 = vadd.f32 %v201, %v267
    %v270 = vadd.f32 %v202, %v268
    %v271 = vmax.f32 %v269, 0.0
    %v272 = vmax.f32 %v270, 0.0
    %v273 = vld [vmem:[%s9] sm:$0xff]
    %v274 = vld [vmem:[%s11] sm:$0x1]
    %v276 = vlaneseq
    %v277 = vshrl.u32 %v276, 7
    %v278 = vsub.s32 0, %v277
    %v279 = vrot.slane %v274, %v278
    %v282 = vsel %vm205, %v271, 0
    %v285 = vsel %vm205, %v272, 0
    %287 = vmatprep.subr.mxu0 0.0
    %288 = vmatpush1.msra.mxu0 %v273
    %289 = vmatprep.subr.mxu0 0.0
    %290 = vmatpush1.msra.mxu0 0.0
    %291 = vmatprep.subr.mxu0 0.0
    %292 = vmatpush1.msra.mxu0 0.0
    %293 = vmatprep.subr.mxu0 0.0
    %294 = vmatpush1.msra.mxu0 0.0
    %295 = vmatprep.subr.mxu0 0.0
    %296 = vmatpush1.msra.mxu0 0.0
    %297 = vmatprep.subr.mxu0 0.0
    %298 = vmatpush1.msra.mxu0 0.0
    %299 = vmatprep.subr.mxu0 0.0
    %300 = vmatpush1.msra.mxu0 0.0
    %301 = vmatprep.subr.mxu0 0.0
    %302 = vmatpush1.msra.mxu0 0.0
    %303 = vmatprep.subr.mxu0 0.0
    %304 = vmatpush1.msra.mxu0 0.0
    %305 = vmatprep.subr.mxu0 0.0
    %306 = vmatpush1.msra.mxu0 0.0
    %307 = vmatprep.subr.mxu0 0.0
    %308 = vmatpush1.msra.mxu0 0.0
    %309 = vmatprep.subr.mxu0 0.0
    %310 = vmatpush1.msra.mxu0 0.0
    %311 = vmatprep.subr.mxu0 0.0
    %312 = vmatpush1.msra.mxu0 0.0
    %313 = vmatprep.subr.mxu0 0.0
    %314 = vmatpush1.msra.mxu0 0.0
    %315 = vmatprep.subr.mxu0 0.0
    %316 = vmatpush1.msra.mxu0 0.0
    %317 = vmatprep.subr.mxu0 0.0
    %318 = vmatpush1.msra.mxu0 0.0
    %319 = vmatprep.subr.mxu0 0.0
    %320 = vmatpush1.msra.mxu0 0.0
    %321 = vmatprep.subr.mxu0 0.0
    %322 = vmatpush1.msra.mxu0 0.0
    %323 = vmatprep.subr.mxu0 0.0
    %324 = vmatpush1.msra.mxu0 0.0
    %325 = vmatprep.subr.mxu0 0.0
    %326 = vmatpush1.msra.mxu0 0.0
    %327 = vmatprep.subr.mxu0 0.0
    %328 = vmatpush1.msra.mxu0 0.0
    %329 = vmatprep.subr.mxu0 0.0
    %330 = vmatpush1.msra.mxu0 0.0
    %331 = vmatprep.subr.mxu0 0.0
    %332 = vmatpush1.msra.mxu0 0.0
    %333 = vmatprep.subr.mxu0 0.0
    %334 = vmatpush1.msra.mxu0 0.0
    %335 = vmatprep.subr.mxu0 0.0
    %336 = vmatpush1.msra.mxu0 0.0
    %337 = vmatprep.subr.mxu0 0.0
    %338 = vmatpush1.msra.mxu0 0.0
    %339 = vmatprep.subr.mxu0 0.0
    %340 = vmatpush1.msra.mxu0 0.0
    %341 = vmatprep.subr.mxu0 0.0
    %342 = vmatpush1.msra.mxu0 0.0
    %343 = vmatprep.subr.mxu0 0.0
    %344 = vmatpush1.msra.mxu0 0.0
    %345 = vmatprep.subr.mxu0 0.0
    %346 = vmatpush1.msra.mxu0 0.0
    %347 = vmatprep.subr.mxu0 0.0
    %348 = vmatpush1.msra.mxu0 0.0
    %349 = vmatprep.subr.mxu0 0.0
    %350 = vmatpush1.msra.mxu0 0.0
    %351 = vmatprep.mubr.f32.mxu0 0.0
    %352 = vmatmul.mubr.f32.gmra.mrb[0].mxu0 %v282
    %v353 = vpop.f32.mrb[0].mxu0
    %v354 = vadd.f32 %v279, %v353
    %v355 = vpop.f32.mrb[0].mxu0
    %356 = vmatprep.mubr.f32.mxu0 0.0
    %357 = vmatmul.mubr.f32.gmra.mrb[0].mxu0 %v285
    %v358 = vpop.f32.mrb[0].mxu0
    %v359 = vadd.f32 %v279, %v358
    %v360 = vpop.f32.mrb[0].mxu0
    %361 = vdwg.mxu0
    %v362 = vld [vmem:[%s21] sm:$0x1]
    %v363 = vld [vmem:[%s23] sm:$0x1]
    %v364 = vsel %vm205, %v354, 0.0
    %365 = vadd.xlane.f32.xlu0 %v364
    %v366 = vpop.xlane.xlu0 %365
    %v367 = vsel %vm205, %v359, 0.0
    %368 = vadd.xlane.f32.xlu0 %v367
    %v369 = vpop.xlane.xlu0 %368
    %v370 = vmul.f32 %v366, %v212
    %v371 = vmul.f32 %v369, %v212
    %v372 = vsub.f32 %v354, %v370
    %v373 = vsub.f32 %v359, %v371
    %v374 = vmul.f32 %v372, %v372
    %v375 = vmul.f32 %v373, %v373
    %v376 = vsel %vm205, %v374, 0.0
    %377 = vadd.xlane.f32.xlu0 %v376
    %v378 = vpop.xlane.xlu0 %377
    %v379 = vsel %vm205, %v375, 0.0
    %380 = vadd.xlane.f32.xlu0 %v379
    %v381 = vpop.xlane.xlu0 %380
    %v382 = vmul.f32 %v378, 0.14285715
    %v383 = vmul.f32 %v381, 0.14285715
    %v384 = vrsqrt.pop %v382
    %v385 = vmul.f32 %v382, %v384
    %vm386 = vcmp.eq.f32.partialorder %v382, inf
    %v387 = vsel %vm386, %v382, %v385
    %vm388 = vcmp.eq.f32.partialorder %v382, 0.0
    %v389 = vand.u32 %v382, 2147483648
    %v390 = vsel %vm388, %v389, %v387
    %v391 = vrsqrt.pop %v383
    %v392 = vmul.f32 %v383, %v391
    %vm393 = vcmp.eq.f32.partialorder %v383, inf
    %v394 = vsel %vm393, %v383, %v392
    %vm395 = vcmp.eq.f32.partialorder %v383, 0.0
    %v396 = vand.u32 %v383, 2147483648
    %v397 = vsel %vm395, %v396, %v394
    %v398 = vadd.f32 %v390, 1e-06
    %v399 = vadd.f32 %v397, 1e-06
    %v400 = vrcp.pop %v398
    %v401 = vrcp.pop %v399
    %v402 = vmul.f32 %v398, %v400
    %v403 = vmul.f32 %v399, %v401
    %v404 = vsub.f32 2.0, %v402
    %v405 = vsub.f32 2.0, %v403
    %v406 = vmul.f32 %v400, %v404
    %v407 = vmul.f32 %v401, %v405
    %v408 = vmul.f32 %v372, %v406
    %v409 = vmul.f32 %v373, %v407
    %v411 = vlaneseq
    %v412 = vshrl.u32 %v411, 7
    %v413 = vsub.s32 0, %v412
    %v414 = vrot.slane %v362, %v413
    %v416 = vmul.f32 %v408, %v414
    %v417 = vmul.f32 %v409, %v414
    %v419 = vlaneseq
    %v420 = vshrl.u32 %v419, 7
    %v421 = vsub.s32 0, %v420
    %v422 = vrot.slane %v363, %v421
    %v424 = vadd.f32 %v416, %v422
    %v425 = vadd.f32 %v417, %v422
    %v426 = vadd.f32 %v354, %v424
    %v427 = vadd.f32 %v359, %v425
    %v428 = vmax.f32 %v426, 0.0
    %v429 = vmax.f32 %v427, 0.0
    %v430 = vld [vmem:[%s13] sm:$0x1]
    %v432 = vlaneseq
    %v433 = vshrl.u32 %v432, 7
    %v434 = vsub.s32 0, %v433
    %v435 = vrot.slane %v430, %v434
    %v437 = vmul.f32 %v428, %v435
    %v438 = vmul.f32 %v429, %v435
    %v439 = vsel %vm205, %v437, 0.0
    %440 = vadd.xlane.f32.xlu0 %v439
    %v441 = vpop.xlane.xlu0 %440
    %v442 = vsel %vm205, %v438, 0.0
    %443 = vadd.xlane.f32.xlu0 %v442
    %v444 = vpop.xlane.xlu0 %443
    %vm445 = vcmask 7168
    %446 = vst.msk [vmem:[#allocation2] sm:$0xff] %vm445, %v441
    %447 = vst.msk [vmem:[#allocation2 + $0x8] sm:$0xff] %vm445, %v444
    %s448 = scalar_lea.vmem [#allocation6], 1
    %v449 = vld [vmem:[%s448] sm:$0x1]
    %s450 = scalar_lea.vmem [#allocation8], 1
    %v451 = vld [vmem:[%s450] sm:$0x1]
    %v453 = vlaneseq
    %v454 = vshrl.u32 %v453, 7
    %v455 = vsub.s32 0, %v454
    %v456 = vrot.slane %v449, %v455
    %v458 = vmul.f32 %v180, %v456
    %v459 = vmul.f32 %v185, %v456
    %v461 = vlaneseq
    %v462 = vshrl.u32 %v461, 7
    %v463 = vsub.s32 0, %v462
    %v464 = vrot.slane %v451, %v463
    %v466 = vadd.f32 %v458, %v464
    %v467 = vadd.f32 %v459, %v464
    %s468 = scalar_lea.vmem %s17, 1
    %v469 = vld [vmem:[%s468] sm:$0x1]
    %s470 = scalar_lea.vmem %s19, 1
    %v471 = vld [vmem:[%s470] sm:$0x1]
    %v472 = vsel %vm205, %v466, 0.0
    %473 = vadd.xlane.f32.xlu0 %v472
    %v474 = vpop.xlane.xlu0 %473
    %v475 = vsel %vm205, %v467, 0.0
    %476 = vadd.xlane.f32.xlu0 %v475
    %v477 = vpop.xlane.xlu0 %476
    %v478 = vmul.f32 %v474, %v212
    %v479 = vmul.f32 %v477, %v212
    %v480 = vsub.f32 %v466, %v478
    %v481 = vsub.f32 %v467, %v479
    %v482 = vmul.f32 %v480, %v480
    %v483 = vmul.f32 %v481, %v481
    %v484 = vsel %vm205, %v482, 0.0
    %485 = vadd.xlane.f32.xlu0 %v484
    %v486 = vpop.xlane.xlu0 %485
    %v487 = vsel %vm205, %v483, 0.0
    %488 = vadd.xlane.f32.xlu0 %v487
    %v489 = vpop.xlane.xlu0 %488
    %v490 = vmul.f32 %v486, 0.14285715
    %v491 = vmul.f32 %v489, 0.14285715
    %v492 = vrsqrt.pop %v490
    %v493 = vmul.f32 %v490, %v492
    %vm494 = vcmp.eq.f32.partialorder %v490, inf
    %v495 = vsel %vm494, %v490, %v493
    %vm496 = vcmp.eq.f32.partialorder %v490, 0.0
    %v497 = vand.u32 %v490, 2147483648
    %v498 = vsel %vm496, %v497, %v495
    %v499 = vrsqrt.pop %v491
    %v500 = vmul.f32 %v491, %v499
    %vm501 = vcmp.eq.f32.partialorder %v491, inf
    %v502 = vsel %vm501, %v491, %v500
    %vm503 = vcmp.eq.f32.partialorder %v491, 0.0
    %v504 = vand.u32 %v491, 2147483648
    %v505 = vsel %vm503, %v504, %v502
    %v506 = vadd.f32 %v498, 1e-06
    %v507 = vadd.f32 %v505, 1e-06
    %v508 = vrcp.pop %v506
    %v509 = vrcp.pop %v507
    %v510 = vmul.f32 %v506, %v508
    %v511 = vmul.f32 %v507, %v509
    %v512 = vsub.f32 2.0, %v510
    %v513 = vsub.f32 2.0, %v511
    %v514 = vmul.f32 %v508, %v512
    %v515 = vmul.f32 %v509, %v513
    %v516 = vmul.f32 %v480, %v514
    %v517 = vmul.f32 %v481, %v515
    %v519 = vlaneseq
    %v520 = vshrl.u32 %v519, 7
    %v521 = vsub.s32 0, %v520
    %v522 = vrot.slane %v469, %v521
    %v524 = vmul.f32 %v516, %v522
    %v525 = vmul.f32 %v517, %v522
    %v527 = vlaneseq
    %v528 = vshrl.u32 %v527, 7
    %v529 = vsub.s32 0, %v528
    %v530 = vrot.slane %v471, %v529
    %v532 = vadd.f32 %v524, %v530
    %v533 = vadd.f32 %v525, %v530
    %v534 = vadd.f32 %v466, %v532
    %v535 = vadd.f32 %v467, %v533
    %v536 = vmax.f32 %v534, 0.0
    %v537 = vmax.f32 %v535, 0.0
    %s538 = scalar_lea.vmem %s9, 8
    %v539 = vld [vmem:[%s538] sm:$0xff]
    %s540 = scalar_lea.vmem %s11, 1
    %v541 = vld [vmem:[%s540] sm:$0x1]
    %v543 = vlaneseq
    %v544 = vshrl.u32 %v543, 7
    %v545 = vsub.s32 0, %v544
    %v546 = vrot.slane %v541, %v545
    %v549 = vsel %vm205, %v536, 0
    %v552 = vsel %vm205, %v537, 0
    %554 = vmatprep.subr.mxu0 0.0
    %555 = vmatpush1.msra.mxu0 %v539
    %556 = vmatprep.subr.mxu0 0.0
    %557 = vmatpush1.msra.mxu0 0.0
    %558 = vmatprep.subr.mxu0 0.0
    %559 = vmatpush1.msra.mxu0 0.0
    %560 = vmatprep.subr.mxu0 0.0
    %561 = vmatpush1.msra.mxu0 0.0
    %562 = vmatprep.subr.mxu0 0.0
    %563 = vmatpush1.msra.mxu0 0.0
    %564 = vmatprep.subr.mxu0 0.0
    %565 = vmatpush1.msra.mxu0 0.0
    %566 = vmatprep.subr.mxu0 0.0
    %567 = vmatpush1.msra.mxu0 0.0
    %568 = vmatprep.subr.mxu0 0.0
    %569 = vmatpush1.msra.mxu0 0.0
    %570 = vmatprep.subr.mxu0 0.0
    %571 = vmatpush1.msra.mxu0 0.0
    %572 = vmatprep.subr.mxu0 0.0
    %573 = vmatpush1.msra.mxu0 0.0
    %574 = vmatprep.subr.mxu0 0.0
    %575 = vmatpush1.msra.mxu0 0.0
    %576 = vmatprep.subr.mxu0 0.0
    %577 = vmatpush1.msra.mxu0 0.0
    %578 = vmatprep.subr.mxu0 0.0
    %579 = vmatpush1.msra.mxu0 0.0
    %580 = vmatprep.subr.mxu0 0.0
    %581 = vmatpush1.msra.mxu0 0.0
    %582 = vmatprep.subr.mxu0 0.0
    %583 = vmatpush1.msra.mxu0 0.0
    %584 = vmatprep.subr.mxu0 0.0
    %585 = vmatpush1.msra.mxu0 0.0
    %586 = vmatprep.subr.mxu0 0.0
    %587 = vmatpush1.msra.mxu0 0.0
    %588 = vmatprep.subr.mxu0 0.0
    %589 = vmatpush1.msra.mxu0 0.0
    %590 = vmatprep.subr.mxu0 0.0
    %591 = vmatpush1.msra.mxu0 0.0
    %592 = vmatprep.subr.mxu0 0.0
    %593 = vmatpush1.msra.mxu0 0.0
    %594 = vmatprep.subr.mxu0 0.0
    %595 = vmatpush1.msra.mxu0 0.0
    %596 = vmatprep.subr.mxu0 0.0
    %597 = vmatpush1.msra.mxu0 0.0
    %598 = vmatprep.subr.mxu0 0.0
    %599 = vmatpush1.msra.mxu0 0.0
    %600 = vmatprep.subr.mxu0 0.0
    %601 = vmatpush1.msra.mxu0 0.0
    %602 = vmatprep.subr.mxu0 0.0
    %603 = vmatpush1.msra.mxu0 0.0
    %604 = vmatprep.subr.mxu0 0.0
    %605 = vmatpush1.msra.mxu0 0.0
    %606 = vmatprep.subr.mxu0 0.0
    %607 = vmatpush1.msra.mxu0 0.0
    %608 = vmatprep.subr.mxu0 0.0
    %609 = vmatpush1.msra.mxu0 0.0
    %610 = vmatprep.subr.mxu0 0.0
    %611 = vmatpush1.msra.mxu0 0.0
    %612 = vmatprep.subr.mxu0 0.0
    %613 = vmatpush1.msra.mxu0 0.0
    %614 = vmatprep.subr.mxu0 0.0
    %615 = vmatpush1.msra.mxu0 0.0
    %616 = vmatprep.subr.mxu0 0.0
    %617 = vmatpush1.msra.mxu0 0.0
    %618 = vmatprep.mubr.f32.mxu0 0.0
    %619 = vmatmul.mubr.f32.gmra.mrb[0].mxu0 %v549
    %v620 = vpop.f32.mrb[0].mxu0
    %v621 = vadd.f32 %v546, %v620
    %v622 = vpop.f32.mrb[0].mxu0
    %623 = vmatprep.mubr.f32.mxu0 0.0
    %624 = vmatmul.mubr.f32.gmra.mrb[0].mxu0 %v552
    %v625 = vpop.f32.mrb[0].mxu0
    %v626 = vadd.f32 %v546, %v625
    %v627 = vpop.f32.mrb[0].mxu0
    %628 = vdwg.mxu0
    %s629 = scalar_lea.vmem %s21, 1
    %v630 = vld [vmem:[%s629] sm:$0x1]
    %s631 = scalar_lea.vmem %s23, 1
    %v632 = vld [vmem:[%s631] sm:$0x1]
    %v633 = vsel %vm205, %v621, 0.0
    %634 = vadd.xlane.f32.xlu0 %v633
    %v635 = vpop.xlane.xlu0 %634
    %v636 = vsel %vm205, %v626, 0.0
    %637 = vadd.xlane.f32.xlu0 %v636
    %v638 = vpop.xlane.xlu0 %637
    %v639 = vmul.f32 %v635, %v212
    %v640 = vmul.f32 %v638, %v212
    %v641 = vsub.f32 %v621, %v639
    %v642 = vsub.f32 %v626, %v640
    %v643 = vmul.f32 %v641, %v641
    %v644 = vmul.f32 %v642, %v642
    %v645 = vsel %vm205, %v643, 0.0
    %646 = vadd.xlane.f32.xlu0 %v645
    %v647 = vpop.xlane.xlu0 %646
    %v648 = vsel %vm205, %v644, 0.0
    %649 = vadd.xlane.f32.xlu0 %v648
    %v650 = vpop.xlane.xlu0 %649
    %v651 = vmul.f32 %v647, 0.14285715
    %v652 = vmul.f32 %v650, 0.14285715
    %v653 = vrsqrt.pop %v651
    %v654 = vmul.f32 %v651, %v653
    %vm655 = vcmp.eq.f32.partialorder %v651, inf
    %v656 = vsel %vm655, %v651, %v654
    %vm657 = vcmp.eq.f32.partialorder %v651, 0.0
    %v658 = vand.u32 %v651, 2147483648
    %v659 = vsel %vm657, %v658, %v656
    %v660 = vrsqrt.pop %v652
    %v661 = vmul.f32 %v652, %v660
    %vm662 = vcmp.eq.f32.partialorder %v652, inf
    %v663 = vsel %vm662, %v652, %v661
    %vm664 = vcmp.eq.f32.partialorder %v652, 0.0
    %v665 = vand.u32 %v652, 2147483648
    %v666 = vsel %vm664, %v665, %v663
    %v667 = vadd.f32 %v659, 1e-06
    %v668 = vadd.f32 %v666, 1e-06
    %v669 = vrcp.pop %v667
    %v670 = vrcp.pop %v668
    %v671 = vmul.f32 %v667, %v669
    %v672 = vmul.f32 %v668, %v670
    %v673 = vsub.f32 2.0, %v671
    %v674 = vsub.f32 2.0, %v672
    %v675 = vmul.f32 %v669, %v673
    %v676 = vmul.f32 %v670, %v674
    %v677 = vmul.f32 %v641, %v675
    %v678 = vmul.f32 %v642, %v676
    %v680 = vlaneseq
    %v681 = vshrl.u32 %v680, 7
    %v682 = vsub.s32 0, %v681
    %v683 = vrot.slane %v630, %v682
    %v685 = vmul.f32 %v677, %v683
    %v686 = vmul.f32 %v678, %v683
    %v688 = vlaneseq
    %v689 = vshrl.u32 %v688, 7
    %v690 = vsub.s32 0, %v689
    %v691 = vrot.slane %v632, %v690
    %v693 = vadd.f32 %v685, %v691
    %v694 = vadd.f32 %v686, %v691
    %v695 = vadd.f32 %v621, %v693
    %v696 = vadd.f32 %v626, %v694
    %v697 = vmax.f32 %v695, 0.0
    %v698 = vmax.f32 %v696, 0.0
    %s699 = scalar_lea.vmem %s13, 1
    %v700 = vld [vmem:[%s699] sm:$0x1]
    %v702 = vlaneseq
    %v703 = vshrl.u32 %v702, 7
    %v704 = vsub.s32 0, %v703
    %v705 = vrot.slane %v700, %v704
    %v707 = vmul.f32 %v697, %v705
    %v708 = vmul.f32 %v698, %v705
    %v709 = vsel %vm205, %v707, 0.0
    %710 = vadd.xlane.f32.xlu0 %v709
    %v711 = vpop.xlane.xlu0 %710
    %v712 = vsel %vm205, %v708, 0.0
    %713 = vadd.xlane.f32.xlu0 %v712
    %v714 = vpop.xlane.xlu0 %713
    %vm715 = vcmask 15368
    %716 = vst.msk [vmem:[#allocation2] sm:$0xff] %vm715, %v711
    %717 = vst.msk [vmem:[#allocation2 + $0x8] sm:$0xff] %vm715, %v714
    %s718 = scalar_lea.vmem [#allocation6], 2
    %v719 = vld [vmem:[%s718] sm:$0x1]
    %s720 = scalar_lea.vmem [#allocation8], 2
    %v721 = vld [vmem:[%s720] sm:$0x1]
    %v723 = vlaneseq
    %v724 = vshrl.u32 %v723, 7
    %v725 = vsub.s32 0, %v724
    %v726 = vrot.slane %v719, %v725
    %v728 = vmul.f32 %v180, %v726
    %v729 = vmul.f32 %v185, %v726
    %v731 = vlaneseq
    %v732 = vshrl.u32 %v731, 7
    %v733 = vsub.s32 0, %v732
    %v734 = vrot.slane %v721, %v733
    %v736 = vadd.f32 %v728, %v734
    %v737 = vadd.f32 %v729, %v734
    %s738 = scalar_lea.vmem %s17, 2
    %v739 = vld [vmem:[%s738] sm:$0x1]
    %s740 = scalar_lea.vmem %s19, 2
    %v741 = vld [vmem:[%s740] sm:$0x1]
    %v742 = vsel %vm205, %v736, 0.0
    %743 = vadd.xlane.f32.xlu0 %v742
    %v744 = vpop.xlane.xlu0 %743
    %v745 = vsel %vm205, %v737, 0.0
    %746 = vadd.xlane.f32.xlu0 %v745
    %v747 = vpop.xlane.xlu0 %746
    %v748 = vmul.f32 %v744, %v212
    %v749 = vmul.f32 %v747, %v212
    %v750 = vsub.f32 %v736, %v748
    %v751 = vsub.f32 %v737, %v749
    %v752 = vmul.f32 %v750, %v750
    %v753 = vmul.f32 %v751, %v751
    %v754 = vsel %vm205, %v752, 0.0
    %755 = vadd.xlane.f32.xlu0 %v754
    %v756 = vpop.xlane.xlu0 %755
    %v757 = vsel %vm205, %v753, 0.0
    %758 = vadd.xlane.f32.xlu0 %v757
    %v759 = vpop.xlane.xlu0 %758
    %v760 = vmul.f32 %v756, 0.14285715
    %v761 = vmul.f32 %v759, 0.14285715
    %v762 = vrsqrt.pop %v760
    %v763 = vmul.f32 %v760, %v762
    %vm764 = vcmp.eq.f32.partialorder %v760, inf
    %v765 = vsel %vm764, %v760, %v763
    %vm766 = vcmp.eq.f32.partialorder %v760, 0.0
    %v767 = vand.u32 %v760, 2147483648
    %v768 = vsel %vm766, %v767, %v765
    %v769 = vrsqrt.pop %v761
    %v770 = vmul.f32 %v761, %v769
    %vm771 = vcmp.eq.f32.partialorder %v761, inf
    %v772 = vsel %vm771, %v761, %v770
    %vm773 = vcmp.eq.f32.partialorder %v761, 0.0
    %v774 = vand.u32 %v761, 2147483648
    %v775 = vsel %vm773, %v774, %v772
    %v776 = vadd.f32 %v768, 1e-06
    %v777 = vadd.f32 %v775, 1e-06
    %v778 = vrcp.pop %v776
    %v779 = vrcp.pop %v777
    %v780 = vmul.f32 %v776, %v778
    %v781 = vmul.f32 %v777, %v779
    %v782 = vsub.f32 2.0, %v780
    %v783 = vsub.f32 2.0, %v781
    %v784 = vmul.f32 %v778, %v782
    %v785 = vmul.f32 %v779, %v783
    %v786 = vmul.f32 %v750, %v784
    %v787 = vmul.f32 %v751, %v785
    %v789 = vlaneseq
    %v790 = vshrl.u32 %v789, 7
    %v791 = vsub.s32 0, %v790
    %v792 = vrot.slane %v739, %v791
    %v794 = vmul.f32 %v786, %v792
    %v795 = vmul.f32 %v787, %v792
    %v797 = vlaneseq
    %v798 = vshrl.u32 %v797, 7
    %v799 = vsub.s32 0, %v798
    %v800 = vrot.slane %v741, %v799
    %v802 = vadd.f32 %v794, %v800
    %v803 = vadd.f32 %v795, %v800
    %v804 = vadd.f32 %v736, %v802
    %v805 = vadd.f32 %v737, %v803
    %v806 = vmax.f32 %v804, 0.0
    %v807 = vmax.f32 %v805, 0.0
    %s808 = scalar_lea.vmem %s9, 16
    %v809 = vld [vmem:[%s808] sm:$0xff]
    %s810 = scalar_lea.vmem %s11, 2
    %v811 = vld [vmem:[%s810] sm:$0x1]
    %v813 = vlaneseq
    %v814 = vshrl.u32 %v813, 7
    %v815 = vsub.s32 0, %v814
    %v816 = vrot.slane %v811, %v815
    %v819 = vsel %vm205, %v806, 0
    %v822 = vsel %vm205, %v807, 0
    %824 = vmatprep.subr.mxu0 0.0
    %825 = vmatpush1.msra.mxu0 %v809
    %826 = vmatprep.subr.mxu0 0.0
    %827 = vmatpush1.msra.mxu0 0.0
    %828 = vmatprep.subr.mxu0 0.0
    %829 = vmatpush1.msra.mxu0 0.0
    %830 = vmatprep.subr.mxu0 0.0
    %831 = vmatpush1.msra.mxu0 0.0
    %832 = vmatprep.subr.mxu0 0.0
    %833 = vmatpush1.msra.mxu0 0.0
    %834 = vmatprep.subr.mxu0 0.0
    %835 = vmatpush1.msra.mxu0 0.0
    %836 = vmatprep.subr.mxu0 0.0
    %837 = vmatpush1.msra.mxu0 0.0
    %838 = vmatprep.subr.mxu0 0.0
    %839 = vmatpush1.msra.mxu0 0.0
    %840 = vmatprep.subr.mxu0 0.0
    %841 = vmatpush1.msra.mxu0 0.0
    %842 = vmatprep.subr.mxu0 0.0
    %843 = vmatpush1.msra.mxu0 0.0
    %844 = vmatprep.subr.mxu0 0.0
    %845 = vmatpush1.msra.mxu0 0.0
    %846 = vmatprep.subr.mxu0 0.0
    %847 = vmatpush1.msra.mxu0 0.0
    %848 = vmatprep.subr.mxu0 0.0
    %849 = vmatpush1.msra.mxu0 0.0
    %850 = vmatprep.subr.mxu0 0.0
    %851 = vmatpush1.msra.mxu0 0.0
    %852 = vmatprep.subr.mxu0 0.0
    %853 = vmatpush1.msra.mxu0 0.0
    %854 = vmatprep.subr.mxu0 0.0
    %855 = vmatpush1.msra.mxu0 0.0
    %856 = vmatprep.subr.mxu0 0.0
    %857 = vmatpush1.msra.mxu0 0.0
    %858 = vmatprep.subr.mxu0 0.0
    %859 = vmatpush1.msra.mxu0 0.0
    %860 = vmatprep.subr.mxu0 0.0
    %861 = vmatpush1.msra.mxu0 0.0
    %862 = vmatprep.subr.mxu0 0.0
    %863 = vmatpush1.msra.mxu0 0.0
    %864 = vmatprep.subr.mxu0 0.0
    %865 = vmatpush1.msra.mxu0 0.0
    %866 = vmatprep.subr.mxu0 0.0
    %867 = vmatpush1.msra.mxu0 0.0
    %868 = vmatprep.subr.mxu0 0.0
    %869 = vmatpush1.msra.mxu0 0.0
    %870 = vmatprep.subr.mxu0 0.0
    %871 = vmatpush1.msra.mxu0 0.0
    %872 = vmatprep.subr.mxu0 0.0
    %873 = vmatpush1.msra.mxu0 0.0
    %874 = vmatprep.subr.mxu0 0.0
    %875 = vmatpush1.msra.mxu0 0.0
    %876 = vmatprep.subr.mxu0 0.0
    %877 = vmatpush1.msra.mxu0 0.0
    %878 = vmatprep.subr.mxu0 0.0
    %879 = vmatpush1.msra.mxu0 0.0
    %880 = vmatprep.subr.mxu0 0.0
    %881 = vmatpush1.msra.mxu0 0.0
    %882 = vmatprep.subr.mxu0 0.0
    %883 = vmatpush1.msra.mxu0 0.0
    %884 = vmatprep.subr.mxu0 0.0
    %885 = vmatpush1.msra.mxu0 0.0
    %886 = vmatprep.subr.mxu0 0.0
    %887 = vmatpush1.msra.mxu0 0.0
    %888 = vmatprep.mubr.f32.mxu0 0.0
    %889 = vmatmul.mubr.f32.gmra.mrb[0].mxu0 %v819
    %v890 = vpop.f32.mrb[0].mxu0
    %v891 = vadd.f32 %v816, %v890
    %v892 = vpop.f32.mrb[0].mxu0
    %893 = vmatprep.mubr.f32.mxu0 0.0
    %894 = vmatmul.mubr.f32.gmra.mrb[0].mxu0 %v822
    %v895 = vpop.f32.mrb[0].mxu0
    %v896 = vadd.f32 %v816, %v895
    %v897 = vpop.f32.mrb[0].mxu0
    %898 = vdwg.mxu0
    %s899 = scalar_lea.vmem %s21, 2
    %v900 = vld [vmem:[%s899] sm:$0x1]
    %s901 = scalar_lea.vmem %s23, 2
    %v902 = vld [vmem:[%s901] sm:$0x1]
    %v903 = vsel %vm205, %v891, 0.0
    %904 = vadd.xlane.f32.xlu0 %v903
    %v905 = vpop.xlane.xlu0 %904
    %v906 = vsel %vm205, %v896, 0.0
    %907 = vadd.xlane.f32.xlu0 %v906
    %v908 = vpop.xlane.xlu0 %907
    %v909 = vmul.f32 %v905, %v212
    %v910 = vmul.f32 %v908, %v212
    %v911 = vsub.f32 %v891, %v909
    %v912 = vsub.f32 %v896, %v910
    %v913 = vmul.f32 %v911, %v911
    %v914 = vmul.f32 %v912, %v912
    %v915 = vsel %vm205, %v913, 0.0
    %916 = vadd.xlane.f32.xlu0 %v915
    %v917 = vpop.xlane.xlu0 %916
    %v918 = vsel %vm205, %v914, 0.0
    %919 = vadd.xlane.f32.xlu0 %v918
    %v920 = vpop.xlane.xlu0 %919
    %v921 = vmul.f32 %v917, 0.14285715
    %v922 = vmul.f32 %v920, 0.14285715
    %v923 = vrsqrt.pop %v921
    %v924 = vmul.f32 %v921, %v923
    %vm925 = vcmp.eq.f32.partialorder %v921, inf
    %v926 = vsel %vm925, %v921, %v924
    %vm927 = vcmp.eq.f32.partialorder %v921, 0.0
    %v928 = vand.u32 %v921, 2147483648
    %v929 = vsel %vm927, %v928, %v926
    %v930 = vrsqrt.pop %v922
    %v931 = vmul.f32 %v922, %v930
    %vm932 = vcmp.eq.f32.partialorder %v922, inf
    %v933 = vsel %vm932, %v922, %v931
    %vm934 = vcmp.eq.f32.partialorder %v922, 0.0
    %v935 = vand.u32 %v922, 2147483648
    %v936 = vsel %vm934, %v935, %v933
    %v937 = vadd.f32 %v929, 1e-06
    %v938 = vadd.f32 %v936, 1e-06
    %v939 = vrcp.pop %v937
    %v940 = vrcp.pop %v938
    %v941 = vmul.f32 %v937, %v939
    %v942 = vmul.f32 %v938, %v940
    %v943 = vsub.f32 2.0, %v941
    %v944 = vsub.f32 2.0, %v942
    %v945 = vmul.f32 %v939, %v943
    %v946 = vmul.f32 %v940, %v944
    %v947 = vmul.f32 %v911, %v945
    %v948 = vmul.f32 %v912, %v946
    %v950 = vlaneseq
    %v951 = vshrl.u32 %v950, 7
    %v952 = vsub.s32 0, %v951
    %v953 = vrot.slane %v900, %v952
    %v955 = vmul.f32 %v947, %v953
    %v956 = vmul.f32 %v948, %v953
    %v958 = vlaneseq
    %v959 = vshrl.u32 %v958, 7
    %v960 = vsub.s32 0, %v959
    %v961 = vrot.slane %v902, %v960
    %v963 = vadd.f32 %v955, %v961
    %v964 = vadd.f32 %v956, %v961
    %v965 = vadd.f32 %v891, %v963
    %v966 = vadd.f32 %v896, %v964
    %v967 = vmax.f32 %v965, 0.0
    %v968 = vmax.f32 %v966, 0.0
    %s969 = scalar_lea.vmem %s13, 2
    %v970 = vld [vmem:[%s969] sm:$0x1]
    %v972 = vlaneseq
    %v973 = vshrl.u32 %v972, 7
    %v974 = vsub.s32 0, %v973
    %v975 = vrot.slane %v970, %v974
    %v977 = vmul.f32 %v967, %v975
    %v978 = vmul.f32 %v968, %v975
    %v979 = vsel %vm205, %v977, 0.0
    %980 = vadd.xlane.f32.xlu0 %v979
    %v981 = vpop.xlane.xlu0 %980
    %v982 = vsel %vm205, %v978, 0.0
    %983 = vadd.xlane.f32.xlu0 %v982
    %v984 = vpop.xlane.xlu0 %983
    %vm985 = vcmask 23568
    %986 = vst.msk [vmem:[#allocation2] sm:$0xff] %vm985, %v981
    %987 = vst.msk [vmem:[#allocation2 + $0x8] sm:$0xff] %vm985, %v984
    %v988 = vld [vmem:[#allocation2] sm:$0xff]
    %v989 = vld [vmem:[#allocation2 + $0x8] sm:$0xff]
    %v990 = vld [vmem:[#allocation10] sm:$0x1]
    %v992 = vlaneseq
    %v993 = vshrl.u32 %v992, 7
    %v994 = vsub.s32 0, %v993
    %v995 = vrot.slane %v990, %v994
    %v997 = vadd.f32 %v988, %v995
    %v998 = vadd.f32 %v989, %v995
    %v1000 = vlaneseq
    %v1001 = vshrl.u32 %v1000, 7
    %v1002 = vsub.s32 0, %v1001
    %v1003 = vrot.slane %v174, %v1002
    %v1005 = vmul.f32 %v171, %v1003
    %vm1006 = vcmask 130048
    %v1008 = vsel %vm1006, %v1005, 0
    %1010 = vmatprep.subr.mxu0 0.0
    %1011 = vmatpush1.msra.mxu0 %v997
    %1012 = vmatprep.subr.mxu0 0.0
    %1013 = vmatpush1.msra.mxu0 %v998
    %1014 = vmatprep.subr.mxu0 0.0
    %1015 = vmatpush1.msra.mxu0 0.0
    %1016 = vmatprep.subr.mxu0 0.0
    %1017 = vmatpush1.msra.mxu0 0.0
    %1018 = vmatprep.subr.mxu0 0.0
    %1019 = vmatpush1.msra.mxu0 0.0
    %1020 = vmatprep.subr.mxu0 0.0
    %1021 = vmatpush1.msra.mxu0 0.0
    %1022 = vmatprep.subr.mxu0 0.0
    %1023 = vmatpush1.msra.mxu0 0.0
    %1024 = vmatprep.subr.mxu0 0.0
    %1025 = vmatpush1.msra.mxu0 0.0
    %1026 = vmatprep.subr.mxu0 0.0
    %1027 = vmatpush1.msra.mxu0 0.0
    %1028 = vmatprep.subr.mxu0 0.0
    %1029 = vmatpush1.msra.mxu0 0.0
    %1030 = vmatprep.subr.mxu0 0.0
    %1031 = vmatpush1.msra.mxu0 0.0
    %1032 = vmatprep.subr.mxu0 0.0
    %1033 = vmatpush1.msra.mxu0 0.0
    %1034 = vmatprep.subr.mxu0 0.0
    %1035 = vmatpush1.msra.mxu0 0.0
    %1036 = vmatprep.subr.mxu0 0.0
    %1037 = vmatpush1.msra.mxu0 0.0
    %1038 = vmatprep.subr.mxu0 0.0
    %1039 = vmatpush1.msra.mxu0 0.0
    %1040 = vmatprep.subr.mxu0 0.0
    %1041 = vmatpush1.msra.mxu0 0.0
    %1042 = vmatprep.subr.mxu0 0.0
    %1043 = vmatpush1.msra.mxu0 0.0
    %1044 = vmatprep.subr.mxu0 0.0
    %1045 = vmatpush1.msra.mxu0 0.0
    %1046 = vmatprep.subr.mxu0 0.0
    %1047 = vmatpush1.msra.mxu0 0.0
    %1048 = vmatprep.subr.mxu0 0.0
    %1049 = vmatpush1.msra.mxu0 0.0
    %1050 = vmatprep.subr.mxu0 0.0
    %1051 = vmatpush1.msra.mxu0 0.0
    %1052 = vmatprep.subr.mxu0 0.0
    %1053 = vmatpush1.msra.mxu0 0.0
    %1054 = vmatprep.subr.mxu0 0.0
    %1055 = vmatpush1.msra.mxu0 0.0
    %1056 = vmatprep.subr.mxu0 0.0
    %1057 = vmatpush1.msra.mxu0 0.0
    %1058 = vmatprep.subr.mxu0 0.0
    %1059 = vmatpush1.msra.mxu0 0.0
    %1060 = vmatprep.subr.mxu0 0.0
    %1061 = vmatpush1.msra.mxu0 0.0
    %1062 = vmatprep.subr.mxu0 0.0
    %1063 = vmatpush1.msra.mxu0 0.0
    %1064 = vmatprep.subr.mxu0 0.0
    %1065 = vmatpush1.msra.mxu0 0.0
    %1066 = vmatprep.subr.mxu0 0.0
    %1067 = vmatpush1.msra.mxu0 0.0
    %1068 = vmatprep.subr.mxu0 0.0
    %1069 = vmatpush1.msra.mxu0 0.0
    %1070 = vmatprep.subr.mxu0 0.0
    %1071 = vmatpush1.msra.mxu0 0.0
    %1072 = vmatprep.subr.mxu0 0.0
    %1073 = vmatpush1.msra.mxu0 0.0
    %1074 = vmatprep.mubr.f32.mxu0 0.0
    %1075 = vmatmul.mubr.f32.gmra.mrb[0].mxu0 %v1008
    %v1076 = vpop.f32.mrb[0].mxu0
    %v1077 = vadd.f32 0.0, %v1076
    %v1078 = vpop.f32.mrb[0].mxu0
    %1079 = vdwg.mxu0
    %vm1080 = vcmask 23552
    %1081 = vst.msk [vmem:[#allocation4] sm:$0xff] %vm1080, %v1077
    %v1082 = vld [vmem:[%s3] sm:$0xff]
    %v1083 = vld [vmem:[%s3 + $0x8] sm:$0x1]
    %v1084 = vld [vmem:[%s59] sm:$0x1]
    %v1085 = vld [vmem:[%s25] sm:$0x1]
    %v1086 = vld [vmem:[%s27] sm:$0x1]
    %1088 = vset.pattern.permute.xlu0 0
    %1089 = vperm.xlu0 %1088, %v1082
    %v1090 = vpop.permute.xlu0 %1089
    %1093 = vset.pattern.permute.xlu0 0
    %1094 = vperm.xlu0 %1093, %v1083
    %v1095 = vpop.permute.xlu0 %1094
    %v1098 = vlaneseq
    %v1099 = vshrl.u32 %v1098, 7
    %v1100 = vsub.s32 0, %v1099
    %v1101 = vrot.slane %v1085, %v1100
    %v1103 = vmul.f32 %v1090, %v1101
    %v1104 = vmul.f32 %v1095, %v1101
    %v1106 = vlaneseq
    %v1107 = vshrl.u32 %v1106, 7
    %v1108 = vsub.s32 0, %v1107
    %v1109 = vrot.slane %v1086, %v1108
    %v1111 = vadd.f32 %v1103, %v1109
    %v1112 = vadd.f32 %v1104, %v1109
    %v1113 = vld [vmem:[%s33] sm:$0x1]
    %v1114 = vld [vmem:[%s35] sm:$0x1]
    %v1115 = vsel %vm205, %v1111, 0.0
    %1116 = vadd.xlane.f32.xlu0 %v1115
    %v1117 = vpop.xlane.xlu0 %1116
    %vm1118 = vcmask 57344
    %v1119 = vsel %vm1118, %v1112, 0.0
    %1120 = vadd.xlane.f32.xlu0 %v1119
    %v1121 = vpop.xlane.xlu0 %1120
    %v1122 = vmul.f32 %v1117, %v212
    %v1123 = vmul.f32 %v1121, %v212
    %v1124 = vsub.f32 %v1111, %v1122
    %v1125 = vsub.f32 %v1112, %v1123
    %v1126 = vmul.f32 %v1124, %v1124
    %v1127 = vmul.f32 %v1125, %v1125
    %v1128 = vsel %vm205, %v1126, 0.0
    %1129 = vadd.xlane.f32.xlu0 %v1128
    %v1130 = vpop.xlane.xlu0 %1129
    %v1131 = vsel %vm1118, %v1127, 0.0
    %1132 = vadd.xlane.f32.xlu0 %v1131
    %v1133 = vpop.xlane.xlu0 %1132
    %v1134 = vmul.f32 %v1130, 0.14285715
    %v1135 = vmul.f32 %v1133, 0.14285715
    %v1136 = vrsqrt.pop %v1134
    %v1137 = vmul.f32 %v1134, %v1136
    %vm1138 = vcmp.eq.f32.partialorder %v1134, inf
    %v1139 = vsel %vm1138, %v1134, %v1137
    %vm1140 = vcmp.eq.f32.partialorder %v1134, 0.0
    %v1141 = vand.u32 %v1134, 2147483648
    %v1142 = vsel %vm1140, %v1141, %v1139
    %v1143 = vrsqrt.pop %v1135
    %v1144 = vmul.f32 %v1135, %v1143
    %vm1145 = vcmp.eq.f32.partialorder %v1135, inf
    %v1146 = vsel %vm1145, %v1135, %v1144
    %vm1147 = vcmp.eq.f32.partialorder %v1135, 0.0
    %v1148 = vand.u32 %v1135, 2147483648
    %v1149 = vsel %vm1147, %v1148, %v1146
    %v1150 = vadd.f32 %v1142, 1e-06
    %v1151 = vadd.f32 %v1149, 1e-06
    %v1152 = vrcp.pop %v1150
    %v1153 = vrcp.pop %v1151
    %v1154 = vmul.f32 %v1150, %v1152
    %v1155 = vmul.f32 %v1151, %v1153
    %v1156 = vsub.f32 2.0, %v1154
    %v1157 = vsub.f32 2.0, %v1155
    %v1158 = vmul.f32 %v1152, %v1156
    %v1159 = vmul.f32 %v1153, %v1157
    %v1160 = vmul.f32 %v1124, %v1158
    %v1161 = vmul.f32 %v1125, %v1159
    %v1163 = vlaneseq
    %v1164 = vshrl.u32 %v1163, 7
    %v1165 = vsub.s32 0, %v1164
    %v1166 = vrot.slane %v1113, %v1165
    %v1168 = vmul.f32 %v1160, %v1166
    %v1169 = vmul.f32 %v1161, %v1166
    %v1171 = vlaneseq
    %v1172 = vshrl.u32 %v1171, 7
    %v1173 = vsub.s32 0, %v1172
    %v1174 = vrot.slane %v1114, %v1173
    %v1176 = vadd.f32 %v1168, %v1174
    %v1177 = vadd.f32 %v1169, %v1174
    %v1178 = vadd.f32 %v1111, %v1176
    %v1179 = vadd.f32 %v1112, %v1177
    %v1180 = vmax.f32 %v1178, 0.0
    %v1181 = vmax.f32 %v1179, 0.0
    %v1182 = vld [vmem:[%s29] sm:$0x1]
    %v1184 = vlaneseq
    %v1185 = vshrl.u32 %v1184, 7
    %v1186 = vsub.s32 0, %v1185
    %v1187 = vrot.slane %v1182, %v1186
    %v1189 = vmul.f32 %v1180, %v1187
    %v1190 = vmul.f32 %v1181, %v1187
    %v1191 = vsel %vm205, %v1189, 0.0
    %1192 = vadd.xlane.f32.xlu0 %v1191
    %v1193 = vpop.xlane.xlu0 %1192
    %v1194 = vsel %vm1118, %v1190, 0.0
    %1195 = vadd.xlane.f32.xlu0 %v1194
    %v1196 = vpop.xlane.xlu0 %1195
    %1197 = vst.msk [vmem:[#allocation3] sm:$0xff] %vm445, %v1193
    %vm1198 = vcmask 0
    %1199 = vst.msk [vmem:[#allocation3 + $0x8] sm:$0x1] %vm1198, %v1196
    %s1200 = scalar_lea.vmem %s25, 1
    %v1201 = vld [vmem:[%s1200] sm:$0x1]
    %s1202 = scalar_lea.vmem %s27, 1
    %v1203 = vld [vmem:[%s1202] sm:$0x1]
    %v1205 = vlaneseq
    %v1206 = vshrl.u32 %v1205, 7
    %v1207 = vsub.s32 0, %v1206
    %v1208 = vrot.slane %v1201, %v1207
    %v1210 = vmul.f32 %v1090, %v1208
    %v1211 = vmul.f32 %v1095, %v1208
    %v1213 = vlaneseq
    %v1214 = vshrl.u32 %v1213, 7
    %v1215 = vsub.s32 0, %v1214
    %v1216 = vrot.slane %v1203, %v1215
    %v1218 = vadd.f32 %v1210, %v1216
    %v1219 = vadd.f32 %v1211, %v1216
    %s1220 = scalar_lea.vmem %s33, 1
    %v1221 = vld [vmem:[%s1220] sm:$0x1]
    %s1222 = scalar_lea.vmem %s35, 1
    %v1223 = vld [vmem:[%s1222] sm:$0x1]
    %v1224 = vsel %vm205, %v1218, 0.0
    %1225 = vadd.xlane.f32.xlu0 %v1224
    %v1226 = vpop.xlane.xlu0 %1225
    %v1227 = vsel %vm1118, %v1219, 0.0
    %1228 = vadd.xlane.f32.xlu0 %v1227
    %v1229 = vpop.xlane.xlu0 %1228
    %v1230 = vmul.f32 %v1226, %v212
    %v1231 = vmul.f32 %v1229, %v212
    %v1232 = vsub.f32 %v1218, %v1230
    %v1233 = vsub.f32 %v1219, %v1231
    %v1234 = vmul.f32 %v1232, %v1232
    %v1235 = vmul.f32 %v1233, %v1233
    %v1236 = vsel %vm205, %v1234, 0.0
    %1237 = vadd.xlane.f32.xlu0 %v1236
    %v1238 = vpop.xlane.xlu0 %1237
    %v1239 = vsel %vm1118, %v1235, 0.0
    %1240 = vadd.xlane.f32.xlu0 %v1239
    %v1241 = vpop.xlane.xlu0 %1240
    %v1242 = vmul.f32 %v1238, 0.14285715
    %v1243 = vmul.f32 %v1241, 0.14285715
    %v1244 = vrsqrt.pop %v1242
    %v1245 = vmul.f32 %v1242, %v1244
    %vm1246 = vcmp.eq.f32.partialorder %v1242, inf
    %v1247 = vsel %vm1246, %v1242, %v1245
    %vm1248 = vcmp.eq.f32.partialorder %v1242, 0.0
    %v1249 = vand.u32 %v1242, 2147483648
    %v1250 = vsel %vm1248, %v1249, %v1247
    %v1251 = vrsqrt.pop %v1243
    %v1252 = vmul.f32 %v1243, %v1251
    %vm1253 = vcmp.eq.f32.partialorder %v1243, inf
    %v1254 = vsel %vm1253, %v1243, %v1252
    %vm1255 = vcmp.eq.f32.partialorder %v1243, 0.0
    %v1256 = vand.u32 %v1243, 2147483648
    %v1257 = vsel %vm1255, %v1256, %v1254
    %v1258 = vadd.f32 %v1250, 1e-06
    %v1259 = vadd.f32 %v1257, 1e-06
    %v1260 = vrcp.pop %v1258
    %v1261 = vrcp.pop %v1259
    %v1262 = vmul.f32 %v1258, %v1260
    %v1263 = vmul.f32 %v1259, %v1261
    %v1264 = vsub.f32 2.0, %v1262
    %v1265 = vsub.f32 2.0, %v1263
    %v1266 = vmul.f32 %v1260, %v1264
    %v1267 = vmul.f32 %v1261, %v1265
    %v1268 = vmul.f32 %v1232, %v1266
    %v1269 = vmul.f32 %v1233, %v1267
    %v1271 = vlaneseq
    %v1272 = vshrl.u32 %v1271, 7
    %v1273 = vsub.s32 0, %v1272
    %v1274 = vrot.slane %v1221, %v1273
    %v1276 = vmul.f32 %v1268, %v1274
    %v1277 = vmul.f32 %v1269, %v1274
    %v1279 = vlaneseq
    %v1280 = vshrl.u32 %v1279, 7
    %v1281 = vsub.s32 0, %v1280
    %v1282 = vrot.slane %v1223, %v1281
    %v1284 = vadd.f32 %v1276, %v1282
    %v1285 = vadd.f32 %v1277, %v1282
    %v1286 = vadd.f32 %v1218, %v1284
    %v1287 = vadd.f32 %v1219, %v1285
    %v1288 = vmax.f32 %v1286, 0.0
    %v1289 = vmax.f32 %v1287, 0.0
    %s1290 = scalar_lea.vmem %s29, 1
    %v1291 = vld [vmem:[%s1290] sm:$0x1]
    %v1293 = vlaneseq
    %v1294 = vshrl.u32 %v1293, 7
    %v1295 = vsub.s32 0, %v1294
    %v1296 = vrot.slane %v1291, %v1295
    %v1298 = vmul.f32 %v1288, %v1296
    %v1299 = vmul.f32 %v1289, %v1296
    %v1300 = vsel %vm205, %v1298, 0.0
    %1301 = vadd.xlane.f32.xlu0 %v1300
    %v1302 = vpop.xlane.xlu0 %1301
    %v1303 = vsel %vm1118, %v1299, 0.0
    %1304 = vadd.xlane.f32.xlu0 %v1303
    %v1305 = vpop.xlane.xlu0 %1304
    %1306 = vst.msk [vmem:[#allocation3] sm:$0xff] %vm715, %v1302
    %vm1307 = vcmask 8200
    %1308 = vst.msk [vmem:[#allocation3 + $0x8] sm:$0x1] %vm1307, %v1305
    %v1309 = vld [vmem:[#allocation3] sm:$0xff]
    %v1310 = vld [vmem:[#allocation3 + $0x8] sm:$0x1]
    %v1311 = vld [vmem:[%s31] sm:$0x1]
    %v1313 = vlaneseq
    %v1314 = vshrl.u32 %v1313, 7
    %v1315 = vsub.s32 0, %v1314
    %v1316 = vrot.slane %v1311, %v1315
    %v1318 = vadd.f32 %v1309, %v1316
    %v1319 = vadd.f32 %v1310, %v1316
    %v1321 = vlaneseq
    %v1322 = vshrl.u32 %v1321, 7
    %v1323 = vsub.s32 0, %v1322
    %v1324 = vrot.slane %v1084, %v1323
    %1325 = vrot.lane.b32.xlu0 %v1324, 16
    %v1326 = vpop.permute.xlu0 %1325
    %v1328 = vmul.f32 %v171, %v1326
    %1330 = vrot.lane.b32.xlu0 %v1328, 112
    %v1331 = vpop.permute.xlu0 %1330
    %vm1332 = vcmask 72704
    %v1333 = vsel %vm1332, %v1331, 0
    %vm1335 = vcmask 1040384
    %v1337 = vsel %vm1335, %v1319, 0
    %1339 = vmatprep.subr.mxu0 0.0
    %1340 = vmatpush1.msra.mxu0 %v1318
    %1341 = vmatprep.subr.mxu0 0.0
    %1342 = vmatpush1.msra.mxu0 %v1337
    %1343 = vmatprep.subr.mxu0 0.0
    %1344 = vmatpush1.msra.mxu0 0.0
    %1345 = vmatprep.subr.mxu0 0.0
    %1346 = vmatpush1.msra.mxu0 0.0
    %1347 = vmatprep.subr.mxu0 0.0
    %1348 = vmatpush1.msra.mxu0 0.0
    %1349 = vmatprep.subr.mxu0 0.0
    %1350 = vmatpush1.msra.mxu0 0.0
    %1351 = vmatprep.subr.mxu0 0.0
    %1352 = vmatpush1.msra.mxu0 0.0
    %1353 = vmatprep.subr.mxu0 0.0
    %1354 = vmatpush1.msra.mxu0 0.0
    %1355 = vmatprep.subr.mxu0 0.0
    %1356 = vmatpush1.msra.mxu0 0.0
    %1357 = vmatprep.subr.mxu0 0.0
    %1358 = vmatpush1.msra.mxu0 0.0
    %1359 = vmatprep.subr.mxu0 0.0
    %1360 = vmatpush1.msra.mxu0 0.0
    %1361 = vmatprep.subr.mxu0 0.0
    %1362 = vmatpush1.msra.mxu0 0.0
    %1363 = vmatprep.subr.mxu0 0.0
    %1364 = vmatpush1.msra.mxu0 0.0
    %1365 = vmatprep.subr.mxu0 0.0
    %1366 = vmatpush1.msra.mxu0 0.0
    %1367 = vmatprep.subr.mxu0 0.0
    %1368 = vmatpush1.msra.mxu0 0.0
    %1369 = vmatprep.subr.mxu0 0.0
    %1370 = vmatpush1.msra.mxu0 0.0
    %1371 = vmatprep.subr.mxu0 0.0
    %1372 = vmatpush1.msra.mxu0 0.0
    %1373 = vmatprep.subr.mxu0 0.0
    %1374 = vmatpush1.msra.mxu0 0.0
    %1375 = vmatprep.subr.mxu0 0.0
    %1376 = vmatpush1.msra.mxu0 0.0
    %1377 = vmatprep.subr.mxu0 0.0
    %1378 = vmatpush1.msra.mxu0 0.0
    %1379 = vmatprep.subr.mxu0 0.0
    %1380 = vmatpush1.msra.mxu0 0.0
    %1381 = vmatprep.subr.mxu0 0.0
    %1382 = vmatpush1.msra.mxu0 0.0
    %1383 = vmatprep.subr.mxu0 0.0
    %1384 = vmatpush1.msra.mxu0 0.0
    %1385 = vmatprep.subr.mxu0 0.0
    %1386 = vmatpush1.msra.mxu0 0.0
    %1387 = vmatprep.subr.mxu0 0.0
    %1388 = vmatpush1.msra.mxu0 0.0
    %1389 = vmatprep.subr.mxu0 0.0
    %1390 = vmatpush1.msra.mxu0 0.0
    %1391 = vmatprep.subr.mxu0 0.0
    %1392 = vmatpush1.msra.mxu0 0.0
    %1393 = vmatprep.subr.mxu0 0.0
    %1394 = vmatpush1.msra.mxu0 0.0
    %1395 = vmatprep.subr.mxu0 0.0
    %1396 = vmatpush1.msra.mxu0 0.0
    %1397 = vmatprep.subr.mxu0 0.0
    %1398 = vmatpush1.msra.mxu0 0.0
    %1399 = vmatprep.subr.mxu0 0.0
    %1400 = vmatpush1.msra.mxu0 0.0
    %1401 = vmatprep.subr.mxu0 0.0
    %1402 = vmatpush1.msra.mxu0 0.0
    %1403 = vmatprep.mubr.f32.mxu0 0.0
    %1404 = vmatmul.mubr.f32.gmra.mrb[0].mxu0 %v1333
    %v1405 = vpop.f32.mrb[0].mxu0
    %v1406 = vadd.f32 0.0, %v1405
    %v1407 = vpop.f32.mrb[0].mxu0
    %1408 = vdwg.mxu0
    %1410 = vrot.lane.b32.xlu0 %v1406, 3
    %v1411 = vpop.permute.xlu0 %1410
    %vm1413 = vcmask 39960
    %1414 = vst.msk [vmem:[#allocation4] sm:$0xff] %vm1413, %v1411
    %1416 = vrot.lane.b32.xlu0 %v171, 108
    %v1417 = vpop.permute.xlu0 %1416
    %vm1419 = vcmask 72744
    %1420 = vst.msk [vmem:[#allocation4] sm:$0xff] %vm1419, %v1417
    %v1421 = vld [vmem:[#allocation4] sm:$0xff]
    %v1422 = vld [vmem:[%s37] sm:$0xff]
    %v1423 = vld [vmem:[%s37 + $0x8] sm:$0x1]
    %v1424 = vld [vmem:[%s39] sm:$0x1]
    %v1426 = vlaneseq
    %v1427 = vshrl.u32 %v1426, 7
    %v1428 = vsub.s32 0, %v1427
    %v1429 = vrot.slane %v1424, %v1428
    %v1432 = vsel %vm1332, %v1421, 0
    %v1435 = vsel %vm1335, %v1423, 0
    %1437 = vmatprep.subr.mxu0 0.0
    %1438 = vmatpush1.msra.mxu0 %v1422
    %1439 = vmatprep.subr.mxu0 0.0
    %1440 = vmatpush1.msra.mxu0 %v1435
    %1441 = vmatprep.subr.mxu0 0.0
    %1442 = vmatpush1.msra.mxu0 0.0
    %1443 = vmatprep.subr.mxu0 0.0
    %1444 = vmatpush1.msra.mxu0 0.0
    %1445 = vmatprep.subr.mxu0 0.0
    %1446 = vmatpush1.msra.mxu0 0.0
    %1447 = vmatprep.subr.mxu0 0.0
    %1448 = vmatpush1.msra.mxu0 0.0
    %1449 = vmatprep.subr.mxu0 0.0
    %1450 = vmatpush1.msra.mxu0 0.0
    %1451 = vmatprep.subr.mxu0 0.0
    %1452 = vmatpush1.msra.mxu0 0.0
    %1453 = vmatprep.subr.mxu0 0.0
    %1454 = vmatpush1.msra.mxu0 0.0
    %1455 = vmatprep.subr.mxu0 0.0
    %1456 = vmatpush1.msra.mxu0 0.0
    %1457 = vmatprep.subr.mxu0 0.0
    %1458 = vmatpush1.msra.mxu0 0.0
    %1459 = vmatprep.subr.mxu0 0.0
    %1460 = vmatpush1.msra.mxu0 0.0
    %1461 = vmatprep.subr.mxu0 0.0
    %1462 = vmatpush1.msra.mxu0 0.0
    %1463 = vmatprep.subr.mxu0 0.0
    %1464 = vmatpush1.msra.mxu0 0.0
    %1465 = vmatprep.subr.mxu0 0.0
    %1466 = vmatpush1.msra.mxu0 0.0
    %1467 = vmatprep.subr.mxu0 0.0
    %1468 = vmatpush1.msra.mxu0 0.0
    %1469 = vmatprep.subr.mxu0 0.0
    %1470 = vmatpush1.msra.mxu0 0.0
    %1471 = vmatprep.subr.mxu0 0.0
    %1472 = vmatpush1.msra.mxu0 0.0
    %1473 = vmatprep.subr.mxu0 0.0
    %1474 = vmatpush1.msra.mxu0 0.0
    %1475 = vmatprep.subr.mxu0 0.0
    %1476 = vmatpush1.msra.mxu0 0.0
    %1477 = vmatprep.subr.mxu0 0.0
    %1478 = vmatpush1.msra.mxu0 0.0
    %1479 = vmatprep.subr.mxu0 0.0
    %1480 = vmatpush1.msra.mxu0 0.0
    %1481 = vmatprep.subr.mxu0 0.0
    %1482 = vmatpush1.msra.mxu0 0.0
    %1483 = vmatprep.subr.mxu0 0.0
    %1484 = vmatpush1.msra.mxu0 0.0
    %1485 = vmatprep.subr.mxu0 0.0
    %1486 = vmatpush1.msra.mxu0 0.0
    %1487 = vmatprep.subr.mxu0 0.0
    %1488 = vmatpush1.msra.mxu0 0.0
    %1489 = vmatprep.subr.mxu0 0.0
    %1490 = vmatpush1.msra.mxu0 0.0
    %1491 = vmatprep.subr.mxu0 0.0
    %1492 = vmatpush1.msra.mxu0 0.0
    %1493 = vmatprep.subr.mxu0 0.0
    %1494 = vmatpush1.msra.mxu0 0.0
    %1495 = vmatprep.subr.mxu0 0.0
    %1496 = vmatpush1.msra.mxu0 0.0
    %1497 = vmatprep.subr.mxu0 0.0
    %1498 = vmatpush1.msra.mxu0 0.0
    %1499 = vmatprep.subr.mxu0 0.0
    %1500 = vmatpush1.msra.mxu0 0.0
    %1501 = vmatprep.mubr.f32.mxu0 0.0
    %1502 = vmatmul.mubr.f32.gmra.mrb[0].mxu0 %v1432
    %v1503 = vpop.f32.mrb[0].mxu0
    %v1504 = vadd.f32 %v1429, %v1503
    %v1505 = vpop.f32.mrb[0].mxu0
    %1506 = vdwg.mxu0
    %v1507 = vld [vmem:[%s49] sm:$0x1]
    %v1508 = vld [vmem:[%s51] sm:$0x1]
    %v1509 = vsel %vm1006, %v1504, 0.0
    %1510 = vadd.xlane.f32.xlu0 %v1509
    %v1511 = vpop.xlane.xlu0 %1510
    %v1512 = vrcp.pop 16.0
    %v1513 = vmul.f32 %v1511, %v1512
    %v1514 = vsub.f32 %v1504, %v1513
    %v1515 = vmul.f32 %v1514, %v1514
    %v1516 = vsel %vm1006, %v1515, 0.0
    %1517 = vadd.xlane.f32.xlu0 %v1516
    %v1518 = vpop.xlane.xlu0 %1517
    %v1519 = vmul.f32 %v1518, 0.06666667
    %v1520 = vrsqrt.pop %v1519
    %v1521 = vmul.f32 %v1519, %v1520
    %vm1522 = vcmp.eq.f32.partialorder %v1519, inf
    %v1523 = vsel %vm1522, %v1519, %v1521
    %vm1524 = vcmp.eq.f32.partialorder %v1519, 0.0
    %v1525 = vand.u32 %v1519, 2147483648
    %v1526 = vsel %vm1524, %v1525, %v1523
    %v1527 = vadd.f32 %v1526, 1e-06
    %v1528 = vrcp.pop %v1527
    %v1529 = vmul.f32 %v1527, %v1528
    %v1530 = vsub.f32 2.0, %v1529
    %v1531 = vmul.f32 %v1528, %v1530
    %v1532 = vmul.f32 %v1514, %v1531
    %v1534 = vlaneseq
    %v1535 = vshrl.u32 %v1534, 7
    %v1536 = vsub.s32 0, %v1535
    %v1537 = vrot.slane %v1507, %v1536
    %v1539 = vmul.f32 %v1532, %v1537
    %v1541 = vlaneseq
    %v1542 = vshrl.u32 %v1541, 7
    %v1543 = vsub.s32 0, %v1542
    %v1544 = vrot.slane %v1508, %v1543
    %v1546 = vadd.f32 %v1539, %v1544
    %v1547 = vadd.f32 %v1504, %v1546
    %v1548 = vmax.f32 %v1547, 0.0
    %v1549 = vld [vmem:[%s41] sm:$0xff]
    %v1550 = vld [vmem:[%s41 + $0x8] sm:$0xff]
    %v1551 = vld [vmem:[%s43] sm:$0x1]
    %v1553 = vlaneseq
    %v1554 = vshrl.u32 %v1553, 7
    %v1555 = vsub.s32 0, %v1554
    %v1556 = vrot.slane %v1551, %v1555
    %v1559 = vsel %vm1006, %v1548, 0
    %1561 = vmatprep.subr.mxu0 0.0
    %1562 = vmatpush1.msra.mxu0 %v1549
    %1563 = vmatprep.subr.mxu0 0.0
    %1564 = vmatpush1.msra.mxu0 %v1550
    %1565 = vmatprep.subr.mxu0 0.0
    %1566 = vmatpush1.msra.mxu0 0.0
    %1567 = vmatprep.subr.mxu0 0.0
    %1568 = vmatpush1.msra.mxu0 0.0
    %1569 = vmatprep.subr.mxu0 0.0
    %1570 = vmatpush1.msra.mxu0 0.0
    %1571 = vmatprep.subr.mxu0 0.0
    %1572 = vmatpush1.msra.mxu0 0.0
    %1573 = vmatprep.subr.mxu0 0.0
    %1574 = vmatpush1.msra.mxu0 0.0
    %1575 = vmatprep.subr.mxu0 0.0
    %1576 = vmatpush1.msra.mxu0 0.0
    %1577 = vmatprep.subr.mxu0 0.0
    %1578 = vmatpush1.msra.mxu0 0.0
    %1579 = vmatprep.subr.mxu0 0.0
    %1580 = vmatpush1.msra.mxu0 0.0
    %1581 = vmatprep.subr.mxu0 0.0
    %1582 = vmatpush1.msra.mxu0 0.0
    %1583 = vmatprep.subr.mxu0 0.0
    %1584 = vmatpush1.msra.mxu0 0.0
    %1585 = vmatprep.subr.mxu0 0.0
    %1586 = vmatpush1.msra.mxu0 0.0
    %1587 = vmatprep.subr.mxu0 0.0
    %1588 = vmatpush1.msra.mxu0 0.0
    %1589 = vmatprep.subr.mxu0 0.0
    %1590 = vmatpush1.msra.mxu0 0.0
    %1591 = vmatprep.subr.mxu0 0.0
    %1592 = vmatpush1.msra.mxu0 0.0
    %1593 = vmatprep.subr.mxu0 0.0
    %1594 = vmatpush1.msra.mxu0 0.0
    %1595 = vmatprep.subr.mxu0 0.0
    %1596 = vmatpush1.msra.mxu0 0.0
    %1597 = vmatprep.subr.mxu0 0.0
    %1598 = vmatpush1.msra.mxu0 0.0
    %1599 = vmatprep.subr.mxu0 0.0
    %1600 = vmatpush1.msra.mxu0 0.0
    %1601 = vmatprep.subr.mxu0 0.0
    %1602 = vmatpush1.msra.mxu0 0.0
    %1603 = vmatprep.subr.mxu0 0.0
    %1604 = vmatpush1.msra.mxu0 0.0
    %1605 = vmatprep.subr.mxu0 0.0
    %1606 = vmatpush1.msra.mxu0 0.0
    %1607 = vmatprep.subr.mxu0 0.0
    %1608 = vmatpush1.msra.mxu0 0.0
    %1609 = vmatprep.subr.mxu0 0.0
    %1610 = vmatpush1.msra.mxu0 0.0
    %1611 = vmatprep.subr.mxu0 0.0
    %1612 = vmatpush1.msra.mxu0 0.0
    %1613 = vmatprep.subr.mxu0 0.0
    %1614 = vmatpush1.msra.mxu0 0.0
    %1615 = vmatprep.subr.mxu0 0.0
    %1616 = vmatpush1.msra.mxu0 0.0
    %1617 = vmatprep.subr.mxu0 0.0
    %1618 = vmatpush1.msra.mxu0 0.0
    %1619 = vmatprep.subr.mxu0 0.0
    %1620 = vmatpush1.msra.mxu0 0.0
    %1621 = vmatprep.subr.mxu0 0.0
    %1622 = vmatpush1.msra.mxu0 0.0
    %1623 = vmatprep.subr.mxu0 0.0
    %1624 = vmatpush1.msra.mxu0 0.0
    %1625 = vmatprep.mubr.f32.mxu0 0.0
    %1626 = vmatmul.mubr.f32.gmra.mrb[0].mxu0 %v1559
    %v1627 = vpop.f32.mrb[0].mxu0
    %v1628 = vadd.f32 %v1556, %v1627
    %v1629 = vpop.f32.mrb[0].mxu0
    %1630 = vdwg.mxu0
    %v1631 = vld [vmem:[%s53] sm:$0x1]
    %v1632 = vld [vmem:[%s55] sm:$0x1]
    %v1633 = vsel %vm1006, %v1628, 0.0
    %1634 = vadd.xlane.f32.xlu0 %v1633
    %v1635 = vpop.xlane.xlu0 %1634
    %v1636 = vmul.f32 %v1635, %v1512
    %v1637 = vsub.f32 %v1628, %v1636
    %v1638 = vmul.f32 %v1637, %v1637
    %v1639 = vsel %vm1006, %v1638, 0.0
    %1640 = vadd.xlane.f32.xlu0 %v1639
    %v1641 = vpop.xlane.xlu0 %1640
    %v1642 = vmul.f32 %v1641, 0.06666667
    %v1643 = vrsqrt.pop %v1642
    %v1644 = vmul.f32 %v1642, %v1643
    %vm1645 = vcmp.eq.f32.partialorder %v1642, inf
    %v1646 = vsel %vm1645, %v1642, %v1644
    %vm1647 = vcmp.eq.f32.partialorder %v1642, 0.0
    %v1648 = vand.u32 %v1642, 2147483648
    %v1649 = vsel %vm1647, %v1648, %v1646
    %v1650 = vadd.f32 %v1649, 1e-06
    %v1651 = vrcp.pop %v1650
    %v1652 = vmul.f32 %v1650, %v1651
    %v1653 = vsub.f32 2.0, %v1652
    %v1654 = vmul.f32 %v1651, %v1653
    %v1655 = vmul.f32 %v1637, %v1654
    %v1657 = vlaneseq
    %v1658 = vshrl.u32 %v1657, 7
    %v1659 = vsub.s32 0, %v1658
    %v1660 = vrot.slane %v1631, %v1659
    %v1662 = vmul.f32 %v1655, %v1660
    %v1664 = vlaneseq
    %v1665 = vshrl.u32 %v1664, 7
    %v1666 = vsub.s32 0, %v1665
    %v1667 = vrot.slane %v1632, %v1666
    %v1669 = vadd.f32 %v1662, %v1667
    %v1670 = vadd.f32 %v1628, %v1669
    %v1671 = vmax.f32 %v1670, 0.0
    %v1672 = vld [vmem:[%s45] sm:$0x1]
    %v1674 = vlaneseq
    %v1675 = vshrl.u32 %v1674, 7
    %v1676 = vsub.s32 0, %v1675
    %v1677 = vrot.slane %v1672, %v1676
    %v1679 = vmul.f32 %v1671, %v1677
    %v1680 = vsel %vm1006, %v1679, 0.0
    %1681 = vadd.xlane.f32.xlu0 %v1680
    %v1682 = vpop.xlane.xlu0 %1681
    %v1683 = vld [vmem:[#allocation5] sm:$0x1]
    %v1685 = vlaneseq
    %v1686 = vshrl.u32 %v1685, 7
    %v1687 = vsub.s32 0, %v1686
    %v1688 = vrot.slane %v1683, %v1687
    %v1690 = vadd.f32 %v1682, %v1688
    %1691 = vst.msk [vmem:[%s63] sm:$0xff] %vm445, %v1690
    // Predicated region
    $region138: #{adafnn_forward.1} parent=1 // pred_check
      _
    $region139: #{adafnn_forward.1} parent=1 // pred_check_branch
      %1693 = sbr.rel (0) target = $region141
    $region140: #{adafnn_forward.1} parent=1 // pred_region
      _
    $region141: #{adafnn_forward.1} parent=1 // pred_fallthru
      _
    // Predicated region
    $region142: #{adafnn_forward.1} parent=1 // pred_check
      _
    $region143: #{adafnn_forward.1} parent=1 // pred_check_branch
      %1695 = sbr.rel (0) target = $region145
    $region144: #{adafnn_forward.1} parent=1 // pred_region
      _
    $region145: #{adafnn_forward.1} parent=1 // pred_fallthru
      _
    %1696 = vsyncpa [#allocation7], 1
    %1697 = vsyncpa [#allocation9], 1

</llo_original>
